<compile_context>
chip_gen: v5e
topology: v5e:2x2
jax: 0.10.0
libtpu: 0.0.40
codegen_flags: <defaults>
</compile_context>

<pallas_src>
import functools

import jax
import jax.numpy as jnp
from jax import lax
from jax.experimental import pallas as pl
from jax.experimental.pallas import tpu as pltpu


def _layer_norm(x, gamma, beta, eps):
    mu = jnp.mean(x, axis=-1, keepdims=True)
    xc = x - mu
    var = jnp.mean(xc * xc, axis=-1, keepdims=True)
    return xc * lax.rsqrt(var + eps) * gamma + beta


def _gelu_tanh(x):
    # TODO(synk): torch get_act_fn('gelu') is exact erf-GELU; tanh approximation
    # is used for guaranteed Mosaic lowering (max abs diff ~1e-3).
    c = 0.7978845608028654  # sqrt(2/pi)
    return 0.5 * x * (1.0 + jnp.tanh(c * (x + 0.044715 * x * x * x)))


# Rows of the packed (6, D) parameter block.
_B_OUT, _LN1_G, _LN1_B, _B_FC2, _LN2_G, _LN2_B = range(6)


def _bart_encoder_layer_kernel(x_ref, wqkv_ref, wout3_ref, wfc1_ref, wfc2_ref,
                               bqkv_ref, bfc1_ref, dpar_ref, o_ref, *,
                               num_heads, head_dim, scaling, eps, mxu_dtype,
                               kv_chunk, f_chunk):
    x = x_ref[0].astype(jnp.float32)                       # (T, D)
    T, D = x.shape
    H, hd = num_heads, head_dim
    F = wfc1_ref.shape[1]

    dpar = dpar_ref[...]                                   # (6, D) f32

    # ---- fused QKV projection: one full-width MXU op (bf16 in, f32 acc) ----
    qkv = jnp.dot(x.astype(mxu_dtype), wqkv_ref[...],
                  preferred_element_type=jnp.float32) + bqkv_ref[...]

    q = qkv[:, 0 * D:1 * D] * scaling                      # scale once (f32 VPU)
    k = qkv[:, 1 * D:2 * D]
    v = qkv[:, 2 * D:3 * D]

    # ---- head split: (T, D) -> (H, T, hd); one relayout, no per-head loop ----
    q3 = pltpu.einshape("thd->htd", q.reshape(T, H, hd)).astype(mxu_dtype)
    k3 = pltpu.einshape("thd->htd", k.reshape(T, H, hd)).astype(mxu_dtype)
    v3 = pltpu.einshape("thd->htd", v.reshape(T, H, hd)).astype(mxu_dtype)

    # ---- bidirectional (ENCODER) attention: online softmax over KV chunks ----
    # Scores VMEM bounded to (H, T, kv_chunk); normalization deferred to the
    # (H, T, hd) accumulator.
    n_kv = T // kv_chunk
    m_i = jnp.full((H, T, 1), -jnp.inf, jnp.float32)
    l_i = jnp.zeros((H, T, 1), jnp.float32)
    acc = jnp.zeros((H, T, hd), jnp.float32)
    for c in range(n_kv):
        kc = k3[:, c * kv_chunk:(c + 1) * kv_chunk, :]     # (H, tkv, hd)
        vc = v3[:, c * kv_chunk:(c + 1) * kv_chunk, :]
        s = jnp.einsum('hqd,hkd->hqk', q3, kc,
                       preferred_element_type=jnp.float32)  # (H, T, tkv) f32
        m_new = jnp.maximum(m_i, jnp.max(s, axis=-1, keepdims=True))
        alpha = jnp.exp(m_i - m_new)
        p = jnp.exp(s - m_new)
        l_i = alpha * l_i + jnp.sum(p, axis=-1, keepdims=True)
        acc = alpha * acc + jnp.einsum('hqk,hkd->hqd', p.astype(mxu_dtype), vc,
                                       preferred_element_type=jnp.float32)
        m_i = m_new
    # deferred normalization: multiply the small (H, T, hd) tensor, not (H, T, T)
    o3 = acc * pl.reciprocal(l_i, approx=True)             # (H, T, hd) f32

    # ---- output projection without head-merge transpose ----
    # w_out reshaped to (H, hd, D) in the wrapper: batched MXU matmul + head-sum.
    ctx = jnp.einsum('hqd,hde->hqe', o3.astype(mxu_dtype), wout3_ref[...],
                     preferred_element_type=jnp.float32)    # (H, T, D)
    attn = jnp.sum(ctx, axis=0) + dpar[_B_OUT:_B_OUT + 1]   # (T, D)

    # ---- residual + LayerNorm 1 ----
    h = x + attn
    h = _layer_norm(h, dpar[_LN1_G:_LN1_G + 1], dpar[_LN1_B:_LN1_B + 1], eps)

    # ---- FFN: fc1 -> GELU -> fc2, chunked over F with an f32 accumulator ----
    n_f = F // f_chunk
    h_m = h.astype(mxu_dtype)
    ffn = jnp.zeros((T, D), jnp.float32)
    for c in range(n_f):
        w1c = wfc1_ref[:, c * f_chunk:(c + 1) * f_chunk]   # (D, fc) view-load
        b1c = bfc1_ref[:, c * f_chunk:(c + 1) * f_chunk]   # (1, fc)
        w2c = wfc2_ref[c * f_chunk:(c + 1) * f_chunk, :]   # (fc, D)
        fchunk = jnp.dot(h_m, w1c, preferred_element_type=jnp.float32) + b1c
        fchunk = _gelu_tanh(fchunk)
        ffn = ffn + jnp.dot(fchunk.astype(mxu_dtype), w2c,
                            preferred_element_type=jnp.float32)
    ffn = ffn + dpar[_B_FC2:_B_FC2 + 1]

    # ---- residual + LayerNorm 2 ----
    h = h + ffn
    h = _layer_norm(h, dpar[_LN2_G:_LN2_G + 1], dpar[_LN2_B:_LN2_B + 1], eps)

    # TODO(synk): torch.float16 inf/nan clamp branch not applicable (f32/bf16).
    o_ref[0] = h.astype(o_ref.dtype)


def _pick_chunk(total, target):
    """Largest divisor of `total` that is <= target (keeps static tiling exact)."""
    if total <= target:
        return total
    best = 1
    for c in range(1, target + 1):
        if total % c == 0:
            best = c
    return best


def bart_encoder_layer(hidden_states, w_qkv, b_qkv, w_out, b_out,
                       ln1_g, ln1_b, w_fc1, b_fc1, w_fc2, b_fc2, ln2_g, ln2_b,
                       *, num_heads, eps=1e-5, mxu_dtype=jnp.bfloat16,
                       kv_chunk=None, f_chunk=None, vmem_limit_bytes=None):
    """hidden_states: (B, T, D); w_qkv: (D, 3D); w_out: (D, D);
       w_fc1: (D, F); w_fc2: (F, D); biases / LN params are 1-D.
       Weights should already be stored in `mxu_dtype` (bf16) to avoid a
       per-call HBM cast pass; they are cast here only if they are not."""
    B, T, D = hidden_states.shape
    F = w_fc1.shape[1]
    head_dim = D // num_heads
    scaling = head_dim ** -0.5

    if kv_chunk is None:
        kv_chunk = _pick_chunk(T, 512)
    if f_chunk is None:
        f_chunk = _pick_chunk(F, 1024)
    assert T % kv_chunk == 0 and F % f_chunk == 0

    # Weight matrices feed the MXU. Prefer persistent bf16 storage; cast only
    # if the caller passed f32 (avoids the extra whole-weight HBM pass).
    def _as_mxu(w):
        return w if w.dtype == mxu_dtype else w.astype(mxu_dtype)

    wq = _as_mxu(w_qkv)                                     # (D, 3D)
    wo3 = _as_mxu(w_out).reshape(num_heads, head_dim, D)    # (H, hd, D)
    w1 = _as_mxu(w_fc1)                                     # (D, F)
    w2 = _as_mxu(w_fc2)                                     # (F, D)

    # Biases / LN params stay f32 (VPU math stays f32); pack the D-wide ones.
    bq = b_qkv.reshape(1, 3 * D).astype(jnp.float32)
    b1 = b_fc1.reshape(1, F).astype(jnp.float32)
    dpar = jnp.stack([b_out, ln1_g, ln1_b, b_fc2, ln2_g, ln2_b]).astype(jnp.float32)

    kernel = functools.partial(_bart_encoder_layer_kernel,
                               num_heads=num_heads, head_dim=head_dim,
                               scaling=scaling, eps=eps, mxu_dtype=mxu_dtype,
                               kv_chunk=kv_chunk, f_chunk=f_chunk)

    def const_spec(shape):
        # Constant index_map across the batch grid -> never re-fetched; single
        # buffering halves the resident VMEM for weights/params.
        return pl.BlockSpec(shape, lambda b: (0,) * len(shape),
                            pipeline_mode=pl.Buffered(1))

    # Advisory cost estimate so XLA schedules surrounding work around this call.
    flops = B * (2 * T * D * 3 * D            # qkv projection
                 + 4 * num_heads * T * T * head_dim  # QK^T + PV
                 + 2 * T * D * D              # out projection
                 + 4 * T * D * F)             # fc1 + fc2
    transcendentals = B * (num_heads * T * T + T * F)
    bytes_accessed = (2 * B * T * D * hidden_states.dtype.itemsize
                      + (wq.size + wo3.size + w1.size + w2.size) * wq.dtype.itemsize
                      + (bq.size + b1.size + dpar.size) * 4)

    cparams = dict(dimension_semantics=("parallel",))       # B>=2 -> both TCs busy
    if vmem_limit_bytes is not None:
        cparams["vmem_limit_bytes"] = vmem_limit_bytes

    return pl.pallas_call(
        kernel,
        out_shape=jax.ShapeDtypeStruct((B, T, D), hidden_states.dtype),
        grid_spec=pltpu.PrefetchScalarGridSpec(
            num_scalar_prefetch=0,
            grid=(B,),
            in_specs=[
                pl.BlockSpec((1, T, D), lambda b: (b, 0, 0)),   # hidden_states
                const_spec((D, 3 * D)),                         # W_qkv
                const_spec((num_heads, head_dim, D)),           # W_out (H,hd,D)
                const_spec((D, F)),                             # W_fc1
                const_spec((F, D)),                             # W_fc2
                const_spec((1, 3 * D)),                         # b_qkv
                const_spec((1, F)),                             # b_fc1
                const_spec((6, D)),                             # packed D-params
            ],
            out_specs=pl.BlockSpec((1, T, D), lambda b: (b, 0, 0)),
        ),
        compiler_params=pltpu.CompilerParams(**cparams),
        cost_estimate=pl.CostEstimate(flops=flops,
                                      transcendentals=transcendentals,
                                      bytes_accessed=bytes_accessed),
    )(hidden_states, wq, wo3, w1, w2, bq, b1, dpar)


def _reference(x, w_qkv, b_qkv, w_out, b_out, ln1_g, ln1_b,
               w_fc1, b_fc1, w_fc2, b_fc2, ln2_g, ln2_b, *, num_heads, eps=1e-5):
    """Plain-JAX f32 reference matching the PyTorch BartEncoderLayer forward."""
    B, T, D = x.shape
    hd = D // num_heads
    scaling = hd ** -0.5
    qkv = x @ w_qkv + b_qkv
    q, k, v = qkv[..., :D], qkv[..., D:2 * D], qkv[..., 2 * D:]
    q = q.reshape(B, T, num_heads, hd).transpose(0, 2, 1, 3) * scaling
    k = k.reshape(B, T, num_heads, hd).transpose(0, 2, 1, 3)
    v = v.reshape(B, T, num_heads, hd).transpose(0, 2, 1, 3)
    s = jnp.einsum('bhqd,bhkd->bhqk', q, k)
    p = jax.nn.softmax(s, axis=-1)                      # encoder attn: no mask
    o = jnp.einsum('bhqk,bhkd->bhqd', p, v)
    o = o.transpose(0, 2, 1, 3).reshape(B, T, D)
    attn = o @ w_out + b_out
    h = x + attn
    h = _layer_norm(h, ln1_g, ln1_b, eps)
    f = _gelu_tanh(h @ w_fc1 + b_fc1)
    f = f @ w_fc2 + b_fc2
    h = h + f
    return _layer_norm(h, ln2_g, ln2_b, eps)


if __name__ == "__main__":
    # Small encoder config: d_model=32, heads=4 (head_dim=8), ffn=64, B=2, T=8.
    B, T, D, H, F = 2, 8, 32, 4, 64

    ks = jax.random.split(jax.random.PRNGKey(0), 12)
    x = jax.random.normal(ks[0], (B, T, D), dtype=jnp.float32)
    w_qkv = jax.random.normal(ks[1], (D, 3 * D), dtype=jnp.float32) * 0.05
    b_qkv = jax.random.normal(ks[2], (3 * D,), dtype=jnp.float32) * 0.01
    w_out = jax.random.normal(ks[3], (D, D), dtype=jnp.float32) * 0.05
    b_out = jax.random.normal(ks[4], (D,), dtype=jnp.float32) * 0.01
    ln1_g = 1.0 + 0.1 * jax.random.normal(ks[5], (D,), dtype=jnp.float32)
    ln1_b = 0.1 * jax.random.normal(ks[6], (D,), dtype=jnp.float32)
    w_fc1 = jax.random.normal(ks[7], (D, F), dtype=jnp.float32) * 0.05
    b_fc1 = jax.random.normal(ks[8], (F,), dtype=jnp.float32) * 0.01
    w_fc2 = jax.random.normal(ks[9], (F, D), dtype=jnp.float32) * 0.05
    b_fc2 = jax.random.normal(ks[10], (D,), dtype=jnp.float32) * 0.01
    ln2_g = 1.0 + 0.1 * jax.random.normal(ks[11], (D,), dtype=jnp.float32)
    ln2_b = jnp.zeros((D,), dtype=jnp.float32)

    # Persistent bf16 weight storage (done once, outside the per-call path).
    w_qkv_p = w_qkv.astype(jnp.bfloat16)
    w_out_p = w_out.astype(jnp.bfloat16)
    w_fc1_p = w_fc1.astype(jnp.bfloat16)
    w_fc2_p = w_fc2.astype(jnp.bfloat16)

    out = bart_encoder_layer(x, w_qkv_p, b_qkv, w_out_p, b_out,
                             ln1_g, ln1_b, w_fc1_p, b_fc1, w_fc2_p, b_fc2,
                             ln2_g, ln2_b, num_heads=H)
    out = jax.block_until_ready(out)

    ref = _reference(x, w_qkv, b_qkv, w_out, b_out, ln1_g, ln1_b,
                     w_fc1, b_fc1, w_fc2, b_fc2, ln2_g, ln2_b, num_heads=H)

    assert out.shape == (B, T, D)
    # bf16 MXU operands + approx reciprocal vs pure-f32 reference => loose tol.
    assert jnp.allclose(out, ref, atol=2e-2, rtol=2e-2), \
        f"mismatch vs reference, max abs err={float(jnp.max(jnp.abs(out - ref)))}"

    print("KERNEL_OK")
</pallas_src>

<mosaic_0001>
module attributes {stable_mosaic.version = 11 : i64} {
  func.func @_bart_encoder_layer_kernel(%arg0: i32, %arg1: memref<1x8x32xf32, #tpu.memory_space<vmem>>, %arg2: memref<32x96xbf16, #tpu.memory_space<vmem>>, %arg3: memref<4x8x32xbf16, #tpu.memory_space<vmem>>, %arg4: memref<32x64xbf16, #tpu.memory_space<vmem>>, %arg5: memref<64x32xbf16, #tpu.memory_space<vmem>>, %arg6: memref<1x96xf32, #tpu.memory_space<vmem>>, %arg7: memref<1x64xf32, #tpu.memory_space<vmem>>, %arg8: memref<6x32xf32, #tpu.memory_space<vmem>>, %arg9: memref<1x8x32xf32, #tpu.memory_space<vmem>>) attributes {dimension_semantics = [#tpu.dimension_semantics<parallel>], iteration_bounds = array<i64: 2>, scalar_prefetch = 0 : i64, scratch_operands = 0 : i64, tpu.core_type = #tpu.core_type<tc>, window_params = [{transform_indices = @transform_0, window_bounds = array<i64: 1, 8, 32>}, {pipeline_mode = #tpu.pipeline_mode<synchronous>, transform_indices = @transform_1, window_bounds = array<i64: 32, 96>}, {pipeline_mode = #tpu.pipeline_mode<synchronous>, transform_indices = @transform_2, window_bounds = array<i64: 4, 8, 32>}, {pipeline_mode = #tpu.pipeline_mode<synchronous>, transform_indices = @transform_3, window_bounds = array<i64: 32, 64>}, {pipeline_mode = #tpu.pipeline_mode<synchronous>, transform_indices = @transform_4, window_bounds = array<i64: 64, 32>}, {pipeline_mode = #tpu.pipeline_mode<synchronous>, transform_indices = @transform_5, window_bounds = array<i64: 1, 96>}, {pipeline_mode = #tpu.pipeline_mode<synchronous>, transform_indices = @transform_6, window_bounds = array<i64: 1, 64>}, {pipeline_mode = #tpu.pipeline_mode<synchronous>, transform_indices = @transform_7, window_bounds = array<i64: 6, 32>}, {transform_indices = @transform_8, window_bounds = array<i64: 1, 8, 32>}]} {
    %c0 = arith.constant 0 : index
    %c0_0 = arith.constant 0 : index
    %c0_1 = arith.constant 0 : index
    %0 = vector.load %arg1[%c0, %c0_0, %c0_1] : memref<1x8x32xf32, #tpu.memory_space<vmem>>, vector<1x8x32xf32>
    %1 = vector.shape_cast %0 : vector<1x8x32xf32> to vector<8x32xf32>
    %c0_2 = arith.constant 0 : index
    %c0_3 = arith.constant 0 : index
    %2 = vector.load %arg8[%c0_2, %c0_3] : memref<6x32xf32, #tpu.memory_space<vmem>>, vector<6x32xf32>
    %3 = arith.truncf %1 : vector<8x32xf32> to vector<8x32xbf16>
    %c0_4 = arith.constant 0 : index
    %c0_5 = arith.constant 0 : index
    %4 = vector.load %arg2[%c0_4, %c0_5] : memref<32x96xbf16, #tpu.memory_space<vmem>>, vector<32x96xbf16>
    %cst = arith.constant dense<0.000000e+00> : vector<8x96xf32>
    %5 = tpu.matmul %3, %4, %cst {dimension_numbers = #tpu.dot_dimension_numbers<[1], [0], [0], [1], [0, 0, 1, 1], [], []>} : vector<8x32xbf16>, vector<32x96xbf16>, vector<8x96xf32> -> vector<8x96xf32>
    %c0_6 = arith.constant 0 : index
    %c0_7 = arith.constant 0 : index
    %6 = vector.load %arg6[%c0_6, %c0_7] : memref<1x96xf32, #tpu.memory_space<vmem>>, vector<1x96xf32>
    %7 = vector.broadcast %6 : vector<1x96xf32> to vector<8x96xf32>
    %8 = arith.addf %5, %7 : vector<8x96xf32>
    %9 = vector.extract_strided_slice %8 {offsets = [0, 0], sizes = [8, 32], strides = [1, 1]} : vector<8x96xf32> to vector<8x32xf32>
    %cst_8 = arith.constant 0.353553385 : f32
    %10 = vector.broadcast %cst_8 : f32 to vector<8x32xf32>
    %11 = arith.mulf %9, %10 : vector<8x32xf32>
    %12 = vector.extract_strided_slice %8 {offsets = [0, 32], sizes = [8, 32], strides = [1, 1]} : vector<8x96xf32> to vector<8x32xf32>
    %13 = vector.extract_strided_slice %8 {offsets = [0, 64], sizes = [8, 32], strides = [1, 1]} : vector<8x96xf32> to vector<8x32xf32>
    %14 = vector.shape_cast %11 : vector<8x32xf32> to vector<8x4x8xf32>
    %15 = tpu.transpose %14, [1, 0, 2] : vector<8x4x8xf32> -> vector<4x8x8xf32>
    %16 = arith.truncf %15 : vector<4x8x8xf32> to vector<4x8x8xbf16>
    %17 = vector.shape_cast %12 : vector<8x32xf32> to vector<8x4x8xf32>
    %18 = tpu.transpose %17, [1, 0, 2] : vector<8x4x8xf32> -> vector<4x8x8xf32>
    %19 = arith.truncf %18 : vector<4x8x8xf32> to vector<4x8x8xbf16>
    %20 = vector.shape_cast %13 : vector<8x32xf32> to vector<8x4x8xf32>
    %21 = tpu.transpose %20, [1, 0, 2] : vector<8x4x8xf32> -> vector<4x8x8xf32>
    %22 = arith.truncf %21 : vector<4x8x8xf32> to vector<4x8x8xbf16>
    %cst_9 = arith.constant 0xFF800000 : f32
    %23 = vector.broadcast %cst_9 : f32 to vector<4x8x1xf32>
    %cst_10 = arith.constant 0.000000e+00 : f32
    %24 = vector.broadcast %cst_10 : f32 to vector<4x8x1xf32>
    %cst_11 = arith.constant 0.000000e+00 : f32
    %25 = vector.broadcast %cst_11 : f32 to vector<4x8x8xf32>
    "tpu.trace_start"() <{level = 10 : i32, message = "hqd,hkd->hqk"}> : () -> ()
    %cst_12 = arith.constant dense<0.000000e+00> : vector<4x8x8xf32>
    %26 = tpu.matmul %16, %19, %cst_12 {dimension_numbers = #tpu.dot_dimension_numbers<[2], [2], [1], [1], [0, 0, 0, 1, 1, 1], [0], [0]>} : vector<4x8x8xbf16>, vector<4x8x8xbf16>, vector<4x8x8xf32> -> vector<4x8x8xf32>
    "tpu.trace_stop"() : () -> ()
    %cst_13 = arith.constant dense<0xFF800000> : vector<4x8xf32>
    %27 = vector.multi_reduction <maximumf>, %26, %cst_13 [2] : vector<4x8x8xf32> to vector<4x8xf32>
    %28 = vector.shape_cast %27 : vector<4x8xf32> to vector<4x8x1xf32>
    %29 = arith.maximumf %23, %28 : vector<4x8x1xf32>
    %30 = arith.subf %23, %29 : vector<4x8x1xf32>
    %31 = math.exp %30 : vector<4x8x1xf32>
    %32 = vector.broadcast %29 : vector<4x8x1xf32> to vector<4x8x8xf32>
    %33 = arith.subf %26, %32 : vector<4x8x8xf32>
    %34 = math.exp %33 : vector<4x8x8xf32>
    %35 = arith.mulf %31, %24 : vector<4x8x1xf32>
    %cst_14 = arith.constant dense<0.000000e+00> : vector<4x8xf32>
    %36 = vector.multi_reduction <add>, %34, %cst_14 [2] : vector<4x8x8xf32> to vector<4x8xf32>
    %37 = vector.shape_cast %36 : vector<4x8xf32> to vector<4x8x1xf32>
    %38 = arith.addf %35, %37 : vector<4x8x1xf32>
    %39 = vector.broadcast %31 : vector<4x8x1xf32> to vector<4x8x8xf32>
    %40 = arith.mulf %39, %25 : vector<4x8x8xf32>
    %41 = arith.truncf %34 : vector<4x8x8xf32> to vector<4x8x8xbf16>
    "tpu.trace_start"() <{level = 10 : i32, message = "hqk,hkd->hqd"}> : () -> ()
    %cst_15 = arith.constant dense<0.000000e+00> : vector<4x8x8xf32>
    %42 = tpu.matmul %41, %22, %cst_15 {dimension_numbers = #tpu.dot_dimension_numbers<[2], [1], [1], [2], [0, 0, 0, 1, 1, 2], [0], [0]>} : vector<4x8x8xbf16>, vector<4x8x8xbf16>, vector<4x8x8xf32> -> vector<4x8x8xf32>
    "tpu.trace_stop"() : () -> ()
    %43 = arith.addf %40, %42 : vector<4x8x8xf32>
    %44 = tpu.reciprocal %38 {approx = true} : vector<4x8x1xf32> -> vector<4x8x1xf32>
    %45 = vector.broadcast %44 : vector<4x8x1xf32> to vector<4x8x8xf32>
    %46 = arith.mulf %43, %45 : vector<4x8x8xf32>
    %47 = arith.truncf %46 : vector<4x8x8xf32> to vector<4x8x8xbf16>
    %c0_16 = arith.constant 0 : index
    %c0_17 = arith.constant 0 : index
    %c0_18 = arith.constant 0 : index
    %48 = vector.load %arg3[%c0_16, %c0_17, %c0_18] : memref<4x8x32xbf16, #tpu.memory_space<vmem>>, vector<4x8x32xbf16>
    "tpu.trace_start"() <{level = 10 : i32, message = "hqd,hde->hqe"}> : () -> ()
    %cst_19 = arith.constant dense<0.000000e+00> : vector<4x8x32xf32>
    %49 = tpu.matmul %47, %48, %cst_19 {dimension_numbers = #tpu.dot_dimension_numbers<[2], [1], [1], [2], [0, 0, 0, 1, 1, 2], [0], [0]>} : vector<4x8x8xbf16>, vector<4x8x32xbf16>, vector<4x8x32xf32> -> vector<4x8x32xf32>
    "tpu.trace_stop"() : () -> ()
    %cst_20 = arith.constant dense<0.000000e+00> : vector<8x32xf32>
    %50 = vector.multi_reduction <add>, %49, %cst_20 [0] : vector<4x8x32xf32> to vector<8x32xf32>
    %51 = vector.extract_strided_slice %2 {offsets = [0, 0], sizes = [1, 32], strides = [1, 1]} : vector<6x32xf32> to vector<1x32xf32>
    %52 = vector.broadcast %51 : vector<1x32xf32> to vector<8x32xf32>
    %53 = arith.addf %50, %52 : vector<8x32xf32>
    %54 = arith.addf %1, %53 : vector<8x32xf32>
    %55 = vector.extract_strided_slice %2 {offsets = [1, 0], sizes = [1, 32], strides = [1, 1]} : vector<6x32xf32> to vector<1x32xf32>
    %56 = vector.extract_strided_slice %2 {offsets = [2, 0], sizes = [1, 32], strides = [1, 1]} : vector<6x32xf32> to vector<1x32xf32>
    %cst_21 = arith.constant dense<0.000000e+00> : vector<8xf32>
    %57 = vector.multi_reduction <add>, %54, %cst_21 [1] : vector<8x32xf32> to vector<8xf32>
    %58 = vector.shape_cast %57 : vector<8xf32> to vector<8x1xf32>
    %cst_22 = arith.constant 3.200000e+01 : f32
    %59 = vector.broadcast %cst_22 : f32 to vector<8x1xf32>
    %60 = arith.divf %58, %59 : vector<8x1xf32>
    %61 = vector.broadcast %60 : vector<8x1xf32> to vector<8x32xf32>
    %62 = arith.subf %54, %61 : vector<8x32xf32>
    %63 = arith.mulf %62, %62 : vector<8x32xf32>
    %cst_23 = arith.constant dense<0.000000e+00> : vector<8xf32>
    %64 = vector.multi_reduction <add>, %63, %cst_23 [1] : vector<8x32xf32> to vector<8xf32>
    %65 = vector.shape_cast %64 : vector<8xf32> to vector<8x1xf32>
    %cst_24 = arith.constant 3.200000e+01 : f32
    %66 = vector.broadcast %cst_24 : f32 to vector<8x1xf32>
    %67 = arith.divf %65, %66 : vector<8x1xf32>
    %cst_25 = arith.constant 9.99999974E-6 : f32
    %68 = vector.broadcast %cst_25 : f32 to vector<8x1xf32>
    %69 = arith.addf %67, %68 : vector<8x1xf32>
    %70 = math.rsqrt %69 : vector<8x1xf32>
    %71 = vector.broadcast %70 : vector<8x1xf32> to vector<8x32xf32>
    %72 = arith.mulf %62, %71 : vector<8x32xf32>
    %73 = vector.broadcast %55 : vector<1x32xf32> to vector<8x32xf32>
    %74 = arith.mulf %72, %73 : vector<8x32xf32>
    %75 = vector.broadcast %56 : vector<1x32xf32> to vector<8x32xf32>
    %76 = arith.addf %74, %75 : vector<8x32xf32>
    %77 = arith.truncf %76 : vector<8x32xf32> to vector<8x32xbf16>
    %cst_26 = arith.constant 0.000000e+00 : f32
    %78 = vector.broadcast %cst_26 : f32 to vector<8x32xf32>
    %c0_27 = arith.constant 0 : index
    %c0_28 = arith.constant 0 : index
    %79 = vector.load %arg4[%c0_27, %c0_28] : memref<32x64xbf16, #tpu.memory_space<vmem>>, vector<32x64xbf16>
    %c0_29 = arith.constant 0 : index
    %c0_30 = arith.constant 0 : index
    %80 = vector.load %arg7[%c0_29, %c0_30] : memref<1x64xf32, #tpu.memory_space<vmem>>, vector<1x64xf32>
    %c0_31 = arith.constant 0 : index
    %c0_32 = arith.constant 0 : index
    %81 = vector.load %arg5[%c0_31, %c0_32] : memref<64x32xbf16, #tpu.memory_space<vmem>>, vector<64x32xbf16>
    %cst_33 = arith.constant dense<0.000000e+00> : vector<8x64xf32>
    %82 = tpu.matmul %77, %79, %cst_33 {dimension_numbers = #tpu.dot_dimension_numbers<[1], [0], [0], [1], [0, 0, 1, 1], [], []>} : vector<8x32xbf16>, vector<32x64xbf16>, vector<8x64xf32> -> vector<8x64xf32>
    %83 = vector.broadcast %80 : vector<1x64xf32> to vector<8x64xf32>
    %84 = arith.addf %82, %83 : vector<8x64xf32>
    %cst_34 = arith.constant 5.000000e-01 : f32
    %85 = vector.broadcast %cst_34 : f32 to vector<8x64xf32>
    %86 = arith.mulf %85, %84 : vector<8x64xf32>
    %cst_35 = arith.constant 4.471500e-02 : f32
    %87 = vector.broadcast %cst_35 : f32 to vector<8x64xf32>
    %88 = arith.mulf %87, %84 : vector<8x64xf32>
    %89 = arith.mulf %88, %84 : vector<8x64xf32>
    %90 = arith.mulf %89, %84 : vector<8x64xf32>
    %91 = arith.addf %84, %90 : vector<8x64xf32>
    %cst_36 = arith.constant 0.797884583 : f32
    %92 = vector.broadcast %cst_36 : f32 to vector<8x64xf32>
    %93 = arith.mulf %92, %91 : vector<8x64xf32>
    %94 = math.tanh %93 : vector<8x64xf32>
    %cst_37 = arith.constant 1.000000e+00 : f32
    %95 = vector.broadcast %cst_37 : f32 to vector<8x64xf32>
    %96 = arith.addf %95, %94 : vector<8x64xf32>
    %97 = arith.mulf %86, %96 : vector<8x64xf32>
    %98 = arith.truncf %97 : vector<8x64xf32> to vector<8x64xbf16>
    %cst_38 = arith.constant dense<0.000000e+00> : vector<8x32xf32>
    %99 = tpu.matmul %98, %81, %cst_38 {dimension_numbers = #tpu.dot_dimension_numbers<[1], [0], [0], [1], [0, 0, 1, 1], [], []>} : vector<8x64xbf16>, vector<64x32xbf16>, vector<8x32xf32> -> vector<8x32xf32>
    %100 = arith.addf %78, %99 : vector<8x32xf32>
    %101 = vector.extract_strided_slice %2 {offsets = [3, 0], sizes = [1, 32], strides = [1, 1]} : vector<6x32xf32> to vector<1x32xf32>
    %102 = vector.broadcast %101 : vector<1x32xf32> to vector<8x32xf32>
    %103 = arith.addf %100, %102 : vector<8x32xf32>
    %104 = arith.addf %76, %103 : vector<8x32xf32>
    %105 = vector.extract_strided_slice %2 {offsets = [4, 0], sizes = [1, 32], strides = [1, 1]} : vector<6x32xf32> to vector<1x32xf32>
    %106 = vector.extract_strided_slice %2 {offsets = [5, 0], sizes = [1, 32], strides = [1, 1]} : vector<6x32xf32> to vector<1x32xf32>
    %cst_39 = arith.constant dense<0.000000e+00> : vector<8xf32>
    %107 = vector.multi_reduction <add>, %104, %cst_39 [1] : vector<8x32xf32> to vector<8xf32>
    %108 = vector.shape_cast %107 : vector<8xf32> to vector<8x1xf32>
    %cst_40 = arith.constant 3.200000e+01 : f32
    %109 = vector.broadcast %cst_40 : f32 to vector<8x1xf32>
    %110 = arith.divf %108, %109 : vector<8x1xf32>
    %111 = vector.broadcast %110 : vector<8x1xf32> to vector<8x32xf32>
    %112 = arith.subf %104, %111 : vector<8x32xf32>
    %113 = arith.mulf %112, %112 : vector<8x32xf32>
    %cst_41 = arith.constant dense<0.000000e+00> : vector<8xf32>
    %114 = vector.multi_reduction <add>, %113, %cst_41 [1] : vector<8x32xf32> to vector<8xf32>
    %115 = vector.shape_cast %114 : vector<8xf32> to vector<8x1xf32>
    %cst_42 = arith.constant 3.200000e+01 : f32
    %116 = vector.broadcast %cst_42 : f32 to vector<8x1xf32>
    %117 = arith.divf %115, %116 : vector<8x1xf32>
    %cst_43 = arith.constant 9.99999974E-6 : f32
    %118 = vector.broadcast %cst_43 : f32 to vector<8x1xf32>
    %119 = arith.addf %117, %118 : vector<8x1xf32>
    %120 = math.rsqrt %119 : vector<8x1xf32>
    %121 = vector.broadcast %120 : vector<8x1xf32> to vector<8x32xf32>
    %122 = arith.mulf %112, %121 : vector<8x32xf32>
    %123 = vector.broadcast %105 : vector<1x32xf32> to vector<8x32xf32>
    %124 = arith.mulf %122, %123 : vector<8x32xf32>
    %125 = vector.broadcast %106 : vector<1x32xf32> to vector<8x32xf32>
    %126 = arith.addf %124, %125 : vector<8x32xf32>
    %c0_44 = arith.constant 0 : index
    %c0_45 = arith.constant 0 : index
    %c0_46 = arith.constant 0 : index
    %127 = vector.load %arg9[%c0_44, %c0_45, %c0_46] : memref<1x8x32xf32, #tpu.memory_space<vmem>>, vector<1x8x32xf32>
    %128 = vector.shape_cast %127 : vector<1x8x32xf32> to vector<8x32xf32>
    %129 = vector.shape_cast %126 : vector<8x32xf32> to vector<1x8x32xf32>
    tpu.vector_store %arg9[%c0_44, %c0_45, %c0_46], %129 {strides = array<i32>} : memref<1x8x32xf32, #tpu.memory_space<vmem>>, vector<1x8x32xf32>,
    return
  }
  func.func @transform_0(%arg0: i32) -> (i32, i32, i32) {
    %c0_i32 = arith.constant 0 : i32
    %c0_i32_0 = arith.constant 0 : i32
    %c0_i32_1 = arith.constant 0 : i32
    return %arg0, %c0_i32, %c0_i32_0 : i32, i32, i32
  }
  func.func @transform_1(%arg0: i32) -> (i32, i32) {
    %c0_i32 = arith.constant 0 : i32
    %c0_i32_0 = arith.constant 0 : i32
    %c0_i32_1 = arith.constant 0 : i32
    return %c0_i32, %c0_i32_0 : i32, i32
  }
  func.func @transform_2(%arg0: i32) -> (i32, i32, i32) {
    %c0_i32 = arith.constant 0 : i32
    %c0_i32_0 = arith.constant 0 : i32
    %c0_i32_1 = arith.constant 0 : i32
    %c0_i32_2 = arith.constant 0 : i32
    return %c0_i32, %c0_i32_0, %c0_i32_1 : i32, i32, i32
  }
  func.func @transform_3(%arg0: i32) -> (i32, i32) {
    %c0_i32 = arith.constant 0 : i32
    %c0_i32_0 = arith.constant 0 : i32
    %c0_i32_1 = arith.constant 0 : i32
    return %c0_i32, %c0_i32_0 : i32, i32
  }
  func.func @transform_4(%arg0: i32) -> (i32, i32) {
    %c0_i32 = arith.constant 0 : i32
    %c0_i32_0 = arith.constant 0 : i32
    %c0_i32_1 = arith.constant 0 : i32
    return %c0_i32, %c0_i32_0 : i32, i32
  }
  func.func @transform_5(%arg0: i32) -> (i32, i32) {
    %c0_i32 = arith.constant 0 : i32
    %c0_i32_0 = arith.constant 0 : i32
    %c0_i32_1 = arith.constant 0 : i32
    return %c0_i32, %c0_i32_0 : i32, i32
  }
  func.func @transform_6(%arg0: i32) -> (i32, i32) {
    %c0_i32 = arith.constant 0 : i32
    %c0_i32_0 = arith.constant 0 : i32
    %c0_i32_1 = arith.constant 0 : i32
    return %c0_i32, %c0_i32_0 : i32, i32
  }
  func.func @transform_7(%arg0: i32) -> (i32, i32) {
    %c0_i32 = arith.constant 0 : i32
    %c0_i32_0 = arith.constant 0 : i32
    %c0_i32_1 = arith.constant 0 : i32
    return %c0_i32, %c0_i32_0 : i32, i32
  }
  func.func @transform_8(%arg0: i32) -> (i32, i32, i32) {
    %c0_i32 = arith.constant 0 : i32
    %c0_i32_0 = arith.constant 0 : i32
    %c0_i32_1 = arith.constant 0 : i32
    return %arg0, %c0_i32, %c0_i32_0 : i32, i32, i32
  }
}

</mosaic_0001>

<llo_original>
// kernel: tpu_custom_call.1
$region0: #{tpu_custom_call.1}
  #allocation0 [shape = 'u32[]', space=smem, size = 0x4, offset = 0x4, fixed_abs, tag = 'smem constant byte address 0x4 - core index']
  #allocation1 [shape = 'u32[72,128]{1,0:T(1,128)}', space=vmem, size = 0x9000, scoped, tag = 'internal scratch']
  %s0 = inlined_call_operand.vmem [shape: f32[2,8,32], index: 0, kind: input, shape index: {}]
  %s1 = inlined_call_operand.vmem [shape: bf16[32,96], index: 1, kind: input, shape index: {}]
  %s2 = inlined_call_operand.vmem [shape: bf16[4,8,32], index: 2, kind: input, shape index: {}]
  %s3 = inlined_call_operand.hbm [shape: bf16[32,64], index: 3, kind: input, shape index: {}]
  %s4 = inlined_call_operand.vmem [shape: bf16[64,32], index: 4, kind: input, shape index: {}]
  %s5 = inlined_call_operand.vmem [shape: f32[1,96], index: 5, kind: input, shape index: {}]
  %s6 = inlined_call_operand.vmem [shape: f32[1,64], index: 6, kind: input, shape index: {}]
  %s7 = inlined_call_operand.hbm [shape: f32[6,32], index: 7, kind: input, shape index: {}]
  %s8 = inlined_call_operand.hbm [shape: f32[2,8,32], index: 8, kind: output, shape index: {}]
  %s9 = sld [smem:[#allocation0]]
  $region73: #{tpu_custom_call.1} parent=0
    _
  %s11 = ssub.s32 1, %s9
  %s12 = scalar_select 0, %s11, %s9
  $region1: #{tpu_custom_call.1} parent=0
    #allocation2 [shape = 'u8[8192]{0}', space=vmem, size = 0x2000, scoped, tag = 'input window, operand 3, single buffered']
    #allocation3 [shape = 's32[2]{0}', space=sflag, size = 0x8, scoped, tag = 'scoped memory for tpu_custom_call.1']
    #allocation4 [shape = 's32[2]{0}', space=sflag, size = 0x8, scoped, tag = 'scoped memory for tpu_custom_call.1']
    #allocation5 [shape = 'u8[4096]{0}', space=vmem, size = 0x1000, scoped, tag = 'input window, operand 7, single buffered']
    #allocation6 [shape = 's32[1]{0}', space=sflag, size = 0x4, scoped, tag = 'scoped memory for tpu_custom_call.1']
    #allocation7 [shape = 'u8[8192]{0}', space=vmem, size = 0x2000, scoped, tag = 'output window, operand 0']
    %13 = vsyncpa [#allocation3], 0
    %14 = vsyncpa [#allocation6], 0
    %15 = vsyncpa [#allocation4], 0
    %s16 = scalar_lea.sflag [#allocation4], 1
    %17 = vsyncpa %s16, 0
    loop: start=0, step=1, limit=4
    $region2: #{tpu_custom_call.1} parent=1 // loop_pre_header
      _
    $region3: #{tpu_custom_call.1} parent=1 // loop_header
      %s19 = sphi 0, %s23
      %p20 = scmp.ge.s32.totalorder %s19, 4
      %s29 = sphi 0, %s31
      %s32 = sphi 0, %s29
      %s33 = sphi 0, %s32
      %s49 = sphi 0, %s33
      %s53 = sphi 0, %s53
      %s55 = sphi 0, %s53
      %s56 = sphi 0, %s55
      %s70 = sphi 0, %s56
      %s74 = sphi 0, %s74
      %s76 = sphi 0, %s74
      %s77 = sphi 0, %s76
      %s91 = sphi 0, %s77
      %s95 = sphi 0, %s95
      %s97 = sphi 0, %s95
      %s98 = sphi 0, %s97
      %s112 = sphi 0, %s98
      %s116 = sphi 0, %s116
      %s118 = sphi 0, %s116
      %s119 = sphi 0, %s118
      %s133 = sphi 0, %s119
      %s137 = sphi 0, %s137
      %s139 = sphi 0, %s137
      %s140 = sphi 0, %s139
      %s154 = sphi 0, %s140
      %s158 = sphi 0, %s158
      %s160 = sphi 0, %s158
      %s161 = sphi 0, %s160
      %s175 = sphi 0, %s161
      %s179 = sphi 0, %s179
      %s181 = sphi 0, %s179
      %s182 = sphi 0, %s181
      %s196 = sphi 0, %s182
      %s202 = sphi 0, %s204
      %s205 = sphi 0, %s202
      %s206 = sphi 0, %s205
      %s222 = sphi 0, %s206
    $region4: #{tpu_custom_call.1} parent=1 // loop_header_branch
      %22 = sbr.rel (%p20) target = $region8
    $region5: #{tpu_custom_call.1} parent=1 // loop_body
      %s24 = ssub.s32 %s19, 1
      %s25 = ssub.s32 %s19, 2
      %s26 = sadd.s32 %s19, 1
      %s27 = ssub.s32 %s19, %s26
      %p28 = scmp.eq.s32.totalorder %s27, 0
      %s30 = sadd.s32 %s29, 1
      %s31 = scalar_select %p28, %s29, %s30
      %p34 = pneg %p28
      %p35 = scmp.eq.s32.totalorder %s19, 1
      %p36 = por %p34, %p35
      %p37 = scmp.ne.s32.totalorder %s29, %s32
      %p38 = scmp.eq.s32.totalorder %s19, 0
      %p39 = por %p37, %p38
      %p40 = scmp.ne.s32.totalorder %s29, %s32
      %p41 = scmp.eq.s32.totalorder %s24, 1
      %p42 = por %p40, %p41
      %p43 = scmp.ne.s32.totalorder %s32, %s33
      %p44 = scmp.eq.s32.totalorder %s24, 0
      %p45 = por %p43, %p44
      %p46 = scmp.ne.s32.totalorder %s32, %s33
      %p47 = scmp.eq.s32.totalorder %s25, 1
      %p48 = por %p46, %p47
      %p50 = scmp.ne.s32.totalorder %s33, %s49
      %p51 = scmp.eq.s32.totalorder %s25, 0
      %p52 = por %p50, %p51
      %s54 = sadd.s32 %s53, 1
      %p57 = scmp.eq.s32.totalorder %s19, 1
      %p58 = scmp.ne.s32.totalorder %s53, %s55
      %p59 = scmp.eq.s32.totalorder %s19, 0
      %p60 = por %p58, %p59
      %p61 = scmp.ne.s32.totalorder %s53, %s55
      %p62 = scmp.eq.s32.totalorder %s24, 1
      %p63 = por %p61, %p62
      %p64 = scmp.ne.s32.totalorder %s55, %s56
      %p65 = scmp.eq.s32.totalorder %s24, 0
      %p66 = por %p64, %p65
      %p67 = scmp.ne.s32.totalorder %s55, %s56
      %p68 = scmp.eq.s32.totalorder %s25, 1
      %p69 = por %p67, %p68
      %p71 = scmp.ne.s32.totalorder %s56, %s70
      %p72 = scmp.eq.s32.totalorder %s25, 0
      %p73 = por %p71, %p72
      %s75 = sadd.s32 %s74, 1
      %p78 = scmp.eq.s32.totalorder %s19, 1
      %p79 = scmp.ne.s32.totalorder %s74, %s76
      %p80 = scmp.eq.s32.totalorder %s19, 0
      %p81 = por %p79, %p80
      %p82 = scmp.ne.s32.totalorder %s74, %s76
      %p83 = scmp.eq.s32.totalorder %s24, 1
      %p84 = por %p82, %p83
      %p85 = scmp.ne.s32.totalorder %s76, %s77
      %p86 = scmp.eq.s32.totalorder %s24, 0
      %p87 = por %p85, %p86
      %p88 = scmp.ne.s32.totalorder %s76, %s77
      %p89 = scmp.eq.s32.totalorder %s25, 1
      %p90 = por %p88, %p89
      %p92 = scmp.ne.s32.totalorder %s77, %s91
      %p93 = scmp.eq.s32.totalorder %s25, 0
      %p94 = por %p92, %p93
      %s96 = sadd.s32 %s95, 1
      %p99 = scmp.eq.s32.totalorder %s19, 1
      %p100 = scmp.ne.s32.totalorder %s95, %s97
      %p101 = scmp.eq.s32.totalorder %s19, 0
      %p102 = por %p100, %p101
      %p103 = scmp.ne.s32.totalorder %s95, %s97
      %p104 = scmp.eq.s32.totalorder %s24, 1
      %p105 = por %p103, %p104
      %p106 = scmp.ne.s32.totalorder %s97, %s98
      %p107 = scmp.eq.s32.totalorder %s24, 0
      %p108 = por %p106, %p107
      %p109 = scmp.ne.s32.totalorder %s97, %s98
      %p110 = scmp.eq.s32.totalorder %s25, 1
      %p111 = por %p109, %p110
      %p113 = scmp.ne.s32.totalorder %s98, %s112
      %p114 = scmp.eq.s32.totalorder %s25, 0
      %p115 = por %p113, %p114
      %s117 = sadd.s32 %s116, 1
      %p120 = scmp.eq.s32.totalorder %s19, 1
      %p121 = scmp.ne.s32.totalorder %s116, %s118
      %p122 = scmp.eq.s32.totalorder %s19, 0
      %p123 = por %p121, %p122
      %p124 = scmp.ne.s32.totalorder %s116, %s118
      %p125 = scmp.eq.s32.totalorder %s24, 1
      %p126 = por %p124, %p125
      %p127 = scmp.ne.s32.totalorder %s118, %s119
      %p128 = scmp.eq.s32.totalorder %s24, 0
      %p129 = por %p127, %p128
      %p130 = scmp.ne.s32.totalorder %s118, %s119
      %p131 = scmp.eq.s32.totalorder %s25, 1
      %p132 = por %p130, %p131
      %p134 = scmp.ne.s32.totalorder %s119, %s133
      %p135 = scmp.eq.s32.totalorder %s25, 0
      %p136 = por %p134, %p135
      %s138 = sadd.s32 %s137, 1
      %p141 = scmp.eq.s32.totalorder %s19, 1
      %p142 = scmp.ne.s32.totalorder %s137, %s139
      %p143 = scmp.eq.s32.totalorder %s19, 0
      %p144 = por %p142, %p143
      %p145 = scmp.ne.s32.totalorder %s137, %s139
      %p146 = scmp.eq.s32.totalorder %s24, 1
      %p147 = por %p145, %p146
      %p148 = scmp.ne.s32.totalorder %s139, %s140
      %p149 = scmp.eq.s32.totalorder %s24, 0
      %p150 = por %p148, %p149
      %p151 = scmp.ne.s32.totalorder %s139, %s140
      %p152 = scmp.eq.s32.totalorder %s25, 1
      %p153 = por %p151, %p152
      %p155 = scmp.ne.s32.totalorder %s140, %s154
      %p156 = scmp.eq.s32.totalorder %s25, 0
      %p157 = por %p155, %p156
      %s159 = sadd.s32 %s158, 1
      %p162 = scmp.eq.s32.totalorder %s19, 1
      %p163 = scmp.ne.s32.totalorder %s158, %s160
      %p164 = scmp.eq.s32.totalorder %s19, 0
      %p165 = por %p163, %p164
      %p166 = scmp.ne.s32.totalorder %s158, %s160
      %p167 = scmp.eq.s32.totalorder %s24, 1
      %p168 = por %p166, %p167
      %p169 = scmp.ne.s32.totalorder %s160, %s161
      %p170 = scmp.eq.s32.totalorder %s24, 0
      %p171 = por %p169, %p170
      %p172 = scmp.ne.s32.totalorder %s160, %s161
      %p173 = scmp.eq.s32.totalorder %s25, 1
      %p174 = por %p172, %p173
      %p176 = scmp.ne.s32.totalorder %s161, %s175
      %p177 = scmp.eq.s32.totalorder %s25, 0
      %p178 = por %p176, %p177
      %s180 = sadd.s32 %s179, 1
      %p183 = scmp.eq.s32.totalorder %s19, 1
      %p184 = scmp.ne.s32.totalorder %s179, %s181
      %p185 = scmp.eq.s32.totalorder %s19, 0
      %p186 = por %p184, %p185
      %p187 = scmp.ne.s32.totalorder %s179, %s181
      %p188 = scmp.eq.s32.totalorder %s24, 1
      %p189 = por %p187, %p188
      %p190 = scmp.ne.s32.totalorder %s181, %s182
      %p191 = scmp.eq.s32.totalorder %s24, 0
      %p192 = por %p190, %p191
      %p193 = scmp.ne.s32.totalorder %s181, %s182
      %p194 = scmp.eq.s32.totalorder %s25, 1
      %p195 = por %p193, %p194
      %p197 = scmp.ne.s32.totalorder %s182, %s196
      %p198 = scmp.eq.s32.totalorder %s25, 0
      %p199 = por %p197, %p198
      %s200 = ssub.s32 %s19, %s26
      %p201 = scmp.eq.s32.totalorder %s200, 0
      %s203 = sadd.s32 %s202, 1
      %s204 = scalar_select %p201, %s202, %s203
      %p207 = pneg %p201
      %p208 = scmp.eq.s32.totalorder %s19, 1
      %p209 = por %p207, %p208
      %p210 = scmp.ne.s32.totalorder %s202, %s205
      %p211 = scmp.eq.s32.totalorder %s19, 0
      %p212 = por %p210, %p211
      %p213 = scmp.ne.s32.totalorder %s202, %s205
      %p214 = scmp.eq.s32.totalorder %s24, 1
      %p215 = por %p213, %p214
      %p216 = scmp.ne.s32.totalorder %s205, %s206
      %p217 = scmp.eq.s32.totalorder %s24, 0
      %p218 = por %p216, %p217
      %p219 = scmp.ne.s32.totalorder %s205, %s206
      %p220 = scmp.eq.s32.totalorder %s25, 1
      %p221 = por %p219, %p220
      %p223 = scmp.ne.s32.totalorder %s206, %s222
      %p224 = scmp.eq.s32.totalorder %s25, 0
      %p225 = por %p223, %p224
      %p226 = scmp.le.s32.totalorder 1, %s19
      %p227 = scmp.lt.s32.totalorder %s19, 3
      %p228 = pnand %p226, %p227
      %p229 = pneg %p228
      // Predicated region
      $region9: #{tpu_custom_call.1} parent=5 // pred_check
        _
      $region10: #{tpu_custom_call.1} parent=5 // pred_check_branch
        %231 = sbr.rel (%p228) target = $region12
      $region11: #{tpu_custom_call.1} parent=5 // pred_region
        %s232 = ssub.s32 %s19, 1
        // Predicated region
        $region13: #{tpu_custom_call.1} parent=11 // pred_check
          %p233 = pneg %p66
        $region14: #{tpu_custom_call.1} parent=11 // pred_check_branch
          %235 = sbr.rel (%p233) target = $region16
        $region15: #{tpu_custom_call.1} parent=11 // pred_region
          _
        $region16: #{tpu_custom_call.1} parent=11 // pred_fallthru
          _
        // Predicated region
        $region17: #{tpu_custom_call.1} parent=11 // pred_check
          %p236 = pneg %p87
        $region18: #{tpu_custom_call.1} parent=11 // pred_check_branch
          %238 = sbr.rel (%p236) target = $region20
        $region19: #{tpu_custom_call.1} parent=11 // pred_region
          _
        $region20: #{tpu_custom_call.1} parent=11 // pred_fallthru
          _
        // Predicated region
        $region21: #{tpu_custom_call.1} parent=11 // pred_check
          %p239 = pneg %p108
        $region22: #{tpu_custom_call.1} parent=11 // pred_check_branch
          %241 = sbr.rel (%p239) target = $region24
        $region23: #{tpu_custom_call.1} parent=11 // pred_region
          %243 = vsyncadd [#allocation3], 0
          %s244 = sshll.u32 %s3, 4
          %s245 = int_to_ptr.hbm [resolvable:$true] %s244
          %s246 = sshll.u32 [#allocation2], 4
          %s247 = int_to_ptr.vmem [resolvable:$true] %s246
          %252 = dma.hbm_to_vmem [thread:$0]  %s245, 256, %s247, [#allocation3], 64, 64, 4
        $region24: #{tpu_custom_call.1} parent=11 // pred_fallthru
          _
        // Predicated region
        $region25: #{tpu_custom_call.1} parent=11 // pred_check
          %p253 = pneg %p129
        $region26: #{tpu_custom_call.1} parent=11 // pred_check_branch
          %255 = sbr.rel (%p253) target = $region28
        $region27: #{tpu_custom_call.1} parent=11 // pred_region
          _
        $region28: #{tpu_custom_call.1} parent=11 // pred_fallthru
          _
        // Predicated region
        $region29: #{tpu_custom_call.1} parent=11 // pred_check
          %p256 = pneg %p150
        $region30: #{tpu_custom_call.1} parent=11 // pred_check_branch
          %258 = sbr.rel (%p256) target = $region32
        $region31: #{tpu_custom_call.1} parent=11 // pred_region
          _
        $region32: #{tpu_custom_call.1} parent=11 // pred_fallthru
          _
        // Predicated region
        $region33: #{tpu_custom_call.1} parent=11 // pred_check
          %p259 = pneg %p171
        $region34: #{tpu_custom_call.1} parent=11 // pred_check_branch
          %261 = sbr.rel (%p259) target = $region36
        $region35: #{tpu_custom_call.1} parent=11 // pred_region
          _
        $region36: #{tpu_custom_call.1} parent=11 // pred_fallthru
          _
        // Predicated region
        $region37: #{tpu_custom_call.1} parent=11 // pred_check
          %p262 = pneg %p192
        $region38: #{tpu_custom_call.1} parent=11 // pred_check_branch
          %264 = sbr.rel (%p262) target = $region40
        $region39: #{tpu_custom_call.1} parent=11 // pred_region
          %266 = vsyncadd [#allocation6], 0
          %s268 = sshll.u32 %s7, 4
          %s269 = int_to_ptr.hbm [resolvable:$true] %s268
          %s270 = sshll.u32 [#allocation5], 4
          %s271 = int_to_ptr.vmem [resolvable:$true] %s270
          %273 = dma.hbm_to_vmem [thread:$0]  %s269, 128, %s271, [#allocation6]
        $region40: #{tpu_custom_call.1} parent=11 // pred_fallthru
          _
      $region12: #{tpu_custom_call.1} parent=5 // pred_fallthru
        _
      %p274 = scmp.lt.s32.totalorder %s19, 2
      // Predicated region
      $region41: #{tpu_custom_call.1} parent=5 // pred_check
        %p275 = pneg %p274
      $region42: #{tpu_custom_call.1} parent=5 // pred_check_branch
        %277 = sbr.rel (%p275) target = $region44
      $region43: #{tpu_custom_call.1} parent=5 // pred_region
        // Predicated region
        $region45: #{tpu_custom_call.1} parent=43 // pred_check
          %p278 = pneg %p39
        $region46: #{tpu_custom_call.1} parent=43 // pred_check_branch
          %280 = sbr.rel (%p278) target = $region48
        $region47: #{tpu_custom_call.1} parent=43 // pred_region
          %p281 = scmp.lt.s32.totalorder %s19, 1
          %s282 = scalar_select %p281, %s19, 1
          %s283 = smul.addr %s282, 8
          %s284 = scalar_lea.vmem %s0, %s283
        $region48: #{tpu_custom_call.1} parent=43 // pred_fallthru
          _
      $region44: #{tpu_custom_call.1} parent=5 // pred_fallthru
        _
      %p285 = scmp.le.s32.totalorder 1, %s19
      %p286 = scmp.lt.s32.totalorder %s19, 3
      %p287 = pnand %p285, %p286
      %p288 = pneg %p287
      // Predicated region
      $region49: #{tpu_custom_call.1} parent=5 // pred_check
        _
      $region50: #{tpu_custom_call.1} parent=5 // pred_check_branch
        %290 = sbr.rel (%p287) target = $region52
      $region51: #{tpu_custom_call.1} parent=5 // pred_region
        %s291 = ssub.s32 %s19, 1
        // Predicated region
        $region53: #{tpu_custom_call.1} parent=51 // pred_check
          %p292 = pneg %p108
        $region54: #{tpu_custom_call.1} parent=51 // pred_check_branch
          %294 = sbr.rel (%p292) target = $region56
        $region55: #{tpu_custom_call.1} parent=51 // pred_region
          %296 = dma.done [#allocation3], 256
        $region56: #{tpu_custom_call.1} parent=51 // pred_fallthru
          _
        // Predicated region
        $region57: #{tpu_custom_call.1} parent=51 // pred_check
          %p297 = pneg %p192
        $region58: #{tpu_custom_call.1} parent=51 // pred_check_branch
          %299 = sbr.rel (%p297) target = $region60
        $region59: #{tpu_custom_call.1} parent=51 // pred_region
          %301 = dma.done [#allocation6], 128
        $region60: #{tpu_custom_call.1} parent=51 // pred_fallthru
          _
        %p302 = scmp.lt.s32.totalorder %s24, 1
        %s303 = scalar_select %p302, %s24, 1
        %s304 = smul.addr %s303, 8
        %s305 = scalar_lea.vmem %s0, %s304
        %p306 = pneg %p45
        %p307 = pneg %p42
        %p308 = pneg %p66
        %p309 = pneg %p63
        %p310 = pneg %p87
        %p311 = pneg %p84
        %p312 = pneg %p108
        %p313 = pneg %p105
        %p314 = pneg %p129
        %p315 = pneg %p126
        %p316 = pneg %p150
        %p317 = pneg %p147
        %p318 = pneg %p171
        %p319 = pneg %p168
        %p320 = pneg %p192
        %p321 = pneg %p189
        %p322 = pneg %p218
        %p323 = pneg %p215
        %s324 = sand.u32 %s205, 1
        %s325 = scalar_lea.sflag [#allocation4], %s324
        %s326 = sand.u32 %s205, 1
        %s327 = smul.addr %s326, 8
        %s328 = scalar_lea.vmem [#allocation7], %s327
        %p329 = scmp.lt.s32.totalorder %s24, 1
        %s330 = scalar_select %p329, %s24, 1
        %s331 = smul.addr %s330, 8
        %s332 = scalar_lea.vmem %s0, %s331
        %v334 = vld [vmem:[%s332] sm:$0xff]
        %v335 = vld [vmem:[#allocation5] sm:$0x3f]
        %v336 = vpack.c.bf16 %v334, %v334
        %v337 = vld [vmem:[%s1] sm:$0xf]
        %v338 = vld [vmem:[%s1 + $0x4] sm:$0xf]
        %v339 = vld [vmem:[%s1 + $0x8] sm:$0xf]
        %v340 = vld [vmem:[%s1 + $0xc] sm:$0xf]
        %v341 = vld [vmem:[%s5] sm:$0x1]
        %v343 = vperm.slane %v341, 0
        %v349 = vunpack.c.l.b16 %v337
        %v350 = vunpack.c.l.b16 %v338
        %v351 = vunpack.c.l.b16 %v339
        %v352 = vunpack.c.l.b16 %v340
        %v353 = vpack.c.b16 %v350, %v349
        %v354 = vpack.c.b16 %v352, %v351
        %vm357 = vcmask 261120
        %v359 = vsel %vm357, %v336, 0
        %361 = vmatpush.bf16.msra.mxu0 0
        %362 = vmatpush.bf16.msra.mxu0 0
        %363 = vmatpush.bf16.msra.mxu0 0
        %364 = vmatpush.bf16.msra.mxu0 0
        %365 = vmatpush.bf16.msra.mxu0 0
        %366 = vmatpush.bf16.msra.mxu0 0
        %367 = vmatpush.bf16.msra.mxu0 %v354
        %368 = vmatpush.bf16.msra.mxu0 %v353
        %369 = vmatmul.bf16.gmra.mxu0 %v359
        %v370 = vpop.f32.mrf.mxu0
        %v371 = vadd.f32 %v343, %v370
        %v372 = vpop.f32.mrf.mxu0
        %373 = vdwg.mxu0
        %v374 = vmul.f32 %v371, 0.35355338
        %376 = vrot.lane.b32.xlu0 %v374, 120
        %v377 = vpop.permute.xlu0 %376
        %379 = vrot.lane.b32.xlu0 %v374, 112
        %v380 = vpop.permute.xlu0 %379
        %382 = vrot.lane.b32.xlu0 %v374, 104
        %v383 = vpop.permute.xlu0 %382
        %v385 = vrot.slane %v380, 4
        %vm386 = vcmask 1047556
        %v387 = vsel %vm386, %v385, %v374
        %v388 = vrot.slane %v374, 4
        %v389 = vsel %vm386, %v380, %v388
        %v391 = vunpack.c.l.s4 1983009808
        %v392 = vunpack.c.0.s8 %v391
        %v393 = vperm.slane %v387, %v392
        %v395 = vunpack.c.l.s4 1983009808
        %v396 = vunpack.c.0.s8 %v395
        %v397 = vperm.slane %v389, %v396
        %v398 = vrot.slane %v383, 4
        %v399 = vsel %vm386, %v398, %v377
        %v400 = vrot.slane %v377, 4
        %v401 = vsel %vm386, %v383, %v400
        %v403 = vunpack.c.l.s4 1983009808
        %v404 = vunpack.c.0.s8 %v403
        %v405 = vperm.slane %v399, %v404
        %v407 = vunpack.c.l.s4 1983009808
        %v408 = vunpack.c.0.s8 %v407
        %v409 = vperm.slane %v401, %v408
        %v410 = vrot.slane %v405, 4
        %v411 = vsel %vm386, %v410, %v393
        %v412 = vrot.slane %v393, 4
        %v413 = vsel %vm386, %v405, %v412
        %v415 = vunpack.c.l.s4 1934713408
        %v416 = vunpack.c.0.s8 %v415
        %v417 = vperm.slane %v411, %v416
        %v419 = vunpack.c.l.s4 1934713408
        %v420 = vunpack.c.0.s8 %v419
        %v421 = vperm.slane %v413, %v420
        %v422 = vrot.slane %v409, 4
        %v423 = vsel %vm386, %v422, %v397
        %v424 = vrot.slane %v397, 4
        %v425 = vsel %vm386, %v409, %v424
        %v427 = vunpack.c.l.s4 1934713408
        %v428 = vunpack.c.0.s8 %v427
        %v429 = vperm.slane %v423, %v428
        %v431 = vunpack.c.l.s4 1934713408
        %v432 = vunpack.c.0.s8 %v431
        %v433 = vperm.slane %v425, %v432
        %v434 = vrot.slane %v417, 4
        %v435 = vsel %vm386, 0.0, %v434
        %v436 = vrot.slane %v421, 4
        %v437 = vsel %vm386, 0.0, %v436
        %v438 = vrot.slane %v429, 4
        %v439 = vsel %vm386, 0.0, %v438
        %v440 = vrot.slane %v433, 4
        %v441 = vsel %vm386, 0.0, %v440
        %v442 = vsel %vm386, %v436, %v417
        %v444 = vunpack.c.l.s4 1983009808
        %v445 = vunpack.c.0.s8 %v444
        %v446 = vperm.slane %v442, %v445
        %v447 = vrot.slane %v437, 4
        %v448 = vsel %vm386, %v447, %v435
        %v450 = vunpack.c.l.s4 1983009808
        %v451 = vunpack.c.0.s8 %v450
        %v452 = vperm.slane %v448, %v451
        %v453 = vsel %vm386, %v440, %v429
        %v455 = vunpack.c.l.s4 1983009808
        %v456 = vunpack.c.0.s8 %v455
        %v457 = vperm.slane %v453, %v456
        %v458 = vrot.slane %v441, 4
        %v459 = vsel %vm386, %v458, %v439
        %v461 = vunpack.c.l.s4 1983009808
        %v462 = vunpack.c.0.s8 %v461
        %v463 = vperm.slane %v459, %v462
        %v464 = vrot.slane %v452, 4
        %v465 = vsel %vm386, %v464, %v446
        %v466 = vrot.slane %v446, 4
        %v467 = vsel %vm386, %v452, %v466
        %v469 = vunpack.c.l.s4 1934713408
        %v470 = vunpack.c.0.s8 %v469
        %v471 = vperm.slane %v465, %v470
        %v473 = vunpack.c.l.s4 1934713408
        %v474 = vunpack.c.0.s8 %v473
        %v475 = vperm.slane %v467, %v474
        %v476 = vrot.slane %v463, 4
        %v477 = vsel %vm386, %v476, %v457
        %v478 = vrot.slane %v457, 4
        %v479 = vsel %vm386, %v463, %v478
        %v481 = vunpack.c.l.s4 1934713408
        %v482 = vunpack.c.0.s8 %v481
        %v483 = vperm.slane %v477, %v482
        %v485 = vunpack.c.l.s4 1934713408
        %v486 = vunpack.c.0.s8 %v485
        %v487 = vperm.slane %v479, %v486
        %v488 = vrot.slane %v483, 4
        %v489 = vsel %vm386, %v488, %v471
        %v490 = vrot.slane %v471, 4
        %v491 = vsel %vm386, %v483, %v490
        %v492 = vrot.slane %v487, 4
        %v493 = vsel %vm386, %v492, %v475
        %v494 = vrot.slane %v475, 4
        %v495 = vsel %vm386, %v487, %v494
        %v496 = vpack.c.bf16 %v489, %v489
        %v497 = vpack.c.bf16 %v491, %v491
        %v498 = vpack.c.bf16 %v493, %v493
        %v499 = vpack.c.bf16 %v495, %v495
        %501 = vrot.lane.b32.xlu0 %v371, 120
        %v502 = vpop.permute.xlu0 %501
        %503 = vrot.lane.b32.xlu0 %v371, 112
        %v504 = vpop.permute.xlu0 %503
        %505 = vrot.lane.b32.xlu0 %v371, 104
        %v506 = vpop.permute.xlu0 %505
        %507 = vrot.lane.b32.xlu0 %v371, 96
        %v508 = vpop.permute.xlu0 %507
        %509 = vrot.lane.b32.xlu0 %v502, 96
        %v510 = vpop.permute.xlu0 %509
        %511 = vrot.lane.b32.xlu0 %v504, 96
        %v512 = vpop.permute.xlu0 %511
        %513 = vrot.lane.b32.xlu0 %v506, 96
        %v514 = vpop.permute.xlu0 %513
        %v519 = vrot.slane %v512, 4
        %v520 = vsel %vm386, %v519, %v508
        %v521 = vrot.slane %v508, 4
        %v522 = vsel %vm386, %v512, %v521
        %v524 = vunpack.c.l.s4 1983009808
        %v525 = vunpack.c.0.s8 %v524
        %v526 = vperm.slane %v520, %v525
        %v528 = vunpack.c.l.s4 1983009808
        %v529 = vunpack.c.0.s8 %v528
        %v530 = vperm.slane %v522, %v529
        %v531 = vrot.slane %v514, 4
        %v532 = vsel %vm386, %v531, %v510
        %v533 = vrot.slane %v510, 4
        %v534 = vsel %vm386, %v514, %v533
        %v536 = vunpack.c.l.s4 1983009808
        %v537 = vunpack.c.0.s8 %v536
        %v538 = vperm.slane %v532, %v537
        %v540 = vunpack.c.l.s4 1983009808
        %v541 = vunpack.c.0.s8 %v540
        %v542 = vperm.slane %v534, %v541
        %v543 = vrot.slane %v538, 4
        %v544 = vsel %vm386, %v543, %v526
        %v545 = vrot.slane %v526, 4
        %v546 = vsel %vm386, %v538, %v545
        %v548 = vunpack.c.l.s4 1934713408
        %v549 = vunpack.c.0.s8 %v548
        %v550 = vperm.slane %v544, %v549
        %v552 = vunpack.c.l.s4 1934713408
        %v553 = vunpack.c.0.s8 %v552
        %v554 = vperm.slane %v546, %v553
        %v555 = vrot.slane %v542, 4
        %v556 = vsel %vm386, %v555, %v530
        %v557 = vrot.slane %v530, 4
        %v558 = vsel %vm386, %v542, %v557
        %v560 = vunpack.c.l.s4 1934713408
        %v561 = vunpack.c.0.s8 %v560
        %v562 = vperm.slane %v556, %v561
        %v564 = vunpack.c.l.s4 1934713408
        %v565 = vunpack.c.0.s8 %v564
        %v566 = vperm.slane %v558, %v565
        %v567 = vrot.slane %v550, 4
        %v568 = vsel %vm386, 0.0, %v567
        %v569 = vrot.slane %v554, 4
        %v570 = vsel %vm386, 0.0, %v569
        %v571 = vrot.slane %v562, 4
        %v572 = vsel %vm386, 0.0, %v571
        %v573 = vrot.slane %v566, 4
        %v574 = vsel %vm386, 0.0, %v573
        %v575 = vsel %vm386, %v569, %v550
        %v577 = vunpack.c.l.s4 1983009808
        %v578 = vunpack.c.0.s8 %v577
        %v579 = vperm.slane %v575, %v578
        %v580 = vrot.slane %v570, 4
        %v581 = vsel %vm386, %v580, %v568
        %v583 = vunpack.c.l.s4 1983009808
        %v584 = vunpack.c.0.s8 %v583
        %v585 = vperm.slane %v581, %v584
        %v586 = vsel %vm386, %v573, %v562
        %v588 = vunpack.c.l.s4 1983009808
        %v589 = vunpack.c.0.s8 %v588
        %v590 = vperm.slane %v586, %v589
        %v591 = vrot.slane %v574, 4
        %v592 = vsel %vm386, %v591, %v572
        %v594 = vunpack.c.l.s4 1983009808
        %v595 = vunpack.c.0.s8 %v594
        %v596 = vperm.slane %v592, %v595
        %v597 = vrot.slane %v585, 4
        %v598 = vsel %vm386, %v597, %v579
        %v599 = vrot.slane %v579, 4
        %v600 = vsel %vm386, %v585, %v599
        %v602 = vunpack.c.l.s4 1934713408
        %v603 = vunpack.c.0.s8 %v602
        %v604 = vperm.slane %v598, %v603
        %v606 = vunpack.c.l.s4 1934713408
        %v607 = vunpack.c.0.s8 %v606
        %v608 = vperm.slane %v600, %v607
        %v609 = vrot.slane %v596, 4
        %v610 = vsel %vm386, %v609, %v590
        %v611 = vrot.slane %v590, 4
        %v612 = vsel %vm386, %v596, %v611
        %v614 = vunpack.c.l.s4 1934713408
        %v615 = vunpack.c.0.s8 %v614
        %v616 = vperm.slane %v610, %v615
        %v618 = vunpack.c.l.s4 1934713408
        %v619 = vunpack.c.0.s8 %v618
        %v620 = vperm.slane %v612, %v619
        %v621 = vrot.slane %v616, 4
        %v622 = vsel %vm386, %v621, %v604
        %v623 = vrot.slane %v604, 4
        %v624 = vsel %vm386, %v616, %v623
        %v625 = vrot.slane %v620, 4
        %v626 = vsel %vm386, %v625, %v608
        %v627 = vrot.slane %v608, 4
        %v628 = vsel %vm386, %v620, %v627
        %v629 = vpack.c.bf16 %v622, %v622
        %v630 = vpack.c.bf16 %v624, %v624
        %v631 = vpack.c.bf16 %v626, %v626
        %v632 = vpack.c.bf16 %v628, %v628
        %633 = vrot.lane.b32.xlu0 %v371, 64
        %v634 = vpop.permute.xlu0 %633
        %635 = vrot.lane.b32.xlu0 %v502, 64
        %v636 = vpop.permute.xlu0 %635
        %637 = vrot.lane.b32.xlu0 %v504, 64
        %v638 = vpop.permute.xlu0 %637
        %639 = vrot.lane.b32.xlu0 %v506, 64
        %v640 = vpop.permute.xlu0 %639
        %v645 = vrot.slane %v638, 4
        %v646 = vsel %vm386, %v645, %v634
        %v647 = vrot.slane %v634, 4
        %v648 = vsel %vm386, %v638, %v647
        %v650 = vunpack.c.l.s4 1983009808
        %v651 = vunpack.c.0.s8 %v650
        %v652 = vperm.slane %v646, %v651
        %v654 = vunpack.c.l.s4 1983009808
        %v655 = vunpack.c.0.s8 %v654
        %v656 = vperm.slane %v648, %v655
        %v657 = vrot.slane %v640, 4
        %v658 = vsel %vm386, %v657, %v636
        %v659 = vrot.slane %v636, 4
        %v660 = vsel %vm386, %v640, %v659
        %v662 = vunpack.c.l.s4 1983009808
        %v663 = vunpack.c.0.s8 %v662
        %v664 = vperm.slane %v658, %v663
        %v666 = vunpack.c.l.s4 1983009808
        %v667 = vunpack.c.0.s8 %v666
        %v668 = vperm.slane %v660, %v667
        %v669 = vrot.slane %v664, 4
        %v670 = vsel %vm386, %v669, %v652
        %v671 = vrot.slane %v652, 4
        %v672 = vsel %vm386, %v664, %v671
        %v674 = vunpack.c.l.s4 1934713408
        %v675 = vunpack.c.0.s8 %v674
        %v676 = vperm.slane %v670, %v675
        %v678 = vunpack.c.l.s4 1934713408
        %v679 = vunpack.c.0.s8 %v678
        %v680 = vperm.slane %v672, %v679
        %v681 = vrot.slane %v668, 4
        %v682 = vsel %vm386, %v681, %v656
        %v683 = vrot.slane %v656, 4
        %v684 = vsel %vm386, %v668, %v683
        %v686 = vunpack.c.l.s4 1934713408
        %v687 = vunpack.c.0.s8 %v686
        %v688 = vperm.slane %v682, %v687
        %v690 = vunpack.c.l.s4 1934713408
        %v691 = vunpack.c.0.s8 %v690
        %v692 = vperm.slane %v684, %v691
        %v693 = vrot.slane %v676, 4
        %v694 = vsel %vm386, 0.0, %v693
        %v695 = vrot.slane %v680, 4
        %v696 = vsel %vm386, 0.0, %v695
        %v697 = vrot.slane %v688, 4
        %v698 = vsel %vm386, 0.0, %v697
        %v699 = vrot.slane %v692, 4
        %v700 = vsel %vm386, 0.0, %v699
        %v701 = vsel %vm386, %v695, %v676
        %v703 = vunpack.c.l.s4 1983009808
        %v704 = vunpack.c.0.s8 %v703
        %v705 = vperm.slane %v701, %v704
        %v706 = vrot.slane %v696, 4
        %v707 = vsel %vm386, %v706, %v694
        %v709 = vunpack.c.l.s4 1983009808
        %v710 = vunpack.c.0.s8 %v709
        %v711 = vperm.slane %v707, %v710
        %v712 = vsel %vm386, %v699, %v688
        %v714 = vunpack.c.l.s4 1983009808
        %v715 = vunpack.c.0.s8 %v714
        %v716 = vperm.slane %v712, %v715
        %v717 = vrot.slane %v700, 4
        %v718 = vsel %vm386, %v717, %v698
        %v720 = vunpack.c.l.s4 1983009808
        %v721 = vunpack.c.0.s8 %v720
        %v722 = vperm.slane %v718, %v721
        %v723 = vrot.slane %v711, 4
        %v724 = vsel %vm386, %v723, %v705
        %v725 = vrot.slane %v705, 4
        %v726 = vsel %vm386, %v711, %v725
        %v728 = vunpack.c.l.s4 1934713408
        %v729 = vunpack.c.0.s8 %v728
        %v730 = vperm.slane %v724, %v729
        %v732 = vunpack.c.l.s4 1934713408
        %v733 = vunpack.c.0.s8 %v732
        %v734 = vperm.slane %v726, %v733
        %v735 = vrot.slane %v722, 4
        %v736 = vsel %vm386, %v735, %v716
        %v737 = vrot.slane %v716, 4
        %v738 = vsel %vm386, %v722, %v737
        %v740 = vunpack.c.l.s4 1934713408
        %v741 = vunpack.c.0.s8 %v740
        %v742 = vperm.slane %v736, %v741
        %v744 = vunpack.c.l.s4 1934713408
        %v745 = vunpack.c.0.s8 %v744
        %v746 = vperm.slane %v738, %v745
        %v747 = vrot.slane %v742, 4
        %v748 = vsel %vm386, %v747, %v730
        %v749 = vrot.slane %v730, 4
        %v750 = vsel %vm386, %v742, %v749
        %v751 = vrot.slane %v746, 4
        %v752 = vsel %vm386, %v751, %v734
        %v753 = vrot.slane %v734, 4
        %v754 = vsel %vm386, %v746, %v753
        %v755 = vpack.c.bf16 %v748, %v748
        %v756 = vpack.c.bf16 %v750, %v750
        %v757 = vpack.c.bf16 %v752, %v752
        %v758 = vpack.c.bf16 %v754, %v754
        %vm759 = vcmask 64512
        %v761 = vsel %vm759, %v496, 0
        %v764 = vsel %vm759, %v629, 0
        %766 = vmatpush.bf16.xpose.msra.mxu0 0
        %767 = vmatpush.bf16.xpose.msra.mxu0 0
        %768 = vmatpush.bf16.xpose.msra.mxu0 0
        %769 = vmatpush.bf16.xpose.msra.mxu0 0
        %770 = vmatpush.bf16.xpose.msra.mxu0 0
        %771 = vmatpush.bf16.xpose.msra.mxu0 0
        %772 = vmatpush.bf16.xpose.msra.mxu0 0
        %773 = vmatpush.bf16.xpose.msra.mxu0 %v764
        %774 = vmatmul.bf16.gmra.mxu0 %v761
        %v775 = vpop.f32.mrf.mxu0
        %v776 = vadd.f32 0.0, %v775
        %v777 = vpop.f32.mrf.mxu0
        %778 = vdwg.mxu0
        %v780 = vsel %vm759, %v497, 0
        %v783 = vsel %vm759, %v630, 0
        %785 = vmatpush.bf16.xpose.msra.mxu0 0
        %786 = vmatpush.bf16.xpose.msra.mxu0 0
        %787 = vmatpush.bf16.xpose.msra.mxu0 0
        %788 = vmatpush.bf16.xpose.msra.mxu0 0
        %789 = vmatpush.bf16.xpose.msra.mxu0 0
        %790 = vmatpush.bf16.xpose.msra.mxu0 0
        %791 = vmatpush.bf16.xpose.msra.mxu0 0
        %792 = vmatpush.bf16.xpose.msra.mxu0 %v783
        %793 = vmatmul.bf16.gmra.mxu0 %v780
        %v794 = vpop.f32.mrf.mxu0
        %v795 = vadd.f32 0.0, %v794
        %v796 = vpop.f32.mrf.mxu0
        %797 = vdwg.mxu0
        %v799 = vsel %vm759, %v498, 0
        %v802 = vsel %vm759, %v631, 0
        %804 = vmatpush.bf16.xpose.msra.mxu0 0
        %805 = vmatpush.bf16.xpose.msra.mxu0 0
        %806 = vmatpush.bf16.xpose.msra.mxu0 0
        %807 = vmatpush.bf16.xpose.msra.mxu0 0
        %808 = vmatpush.bf16.xpose.msra.mxu0 0
        %809 = vmatpush.bf16.xpose.msra.mxu0 0
        %810 = vmatpush.bf16.xpose.msra.mxu0 0
        %811 = vmatpush.bf16.xpose.msra.mxu0 %v802
        %812 = vmatmul.bf16.gmra.mxu0 %v799
        %v813 = vpop.f32.mrf.mxu0
        %v814 = vadd.f32 0.0, %v813
        %v815 = vpop.f32.mrf.mxu0
        %816 = vdwg.mxu0
        %v818 = vsel %vm759, %v499, 0
        %v821 = vsel %vm759, %v632, 0
        %823 = vmatpush.bf16.xpose.msra.mxu0 0
        %824 = vmatpush.bf16.xpose.msra.mxu0 0
        %825 = vmatpush.bf16.xpose.msra.mxu0 0
        %826 = vmatpush.bf16.xpose.msra.mxu0 0
        %827 = vmatpush.bf16.xpose.msra.mxu0 0
        %828 = vmatpush.bf16.xpose.msra.mxu0 0
        %829 = vmatpush.bf16.xpose.msra.mxu0 0
        %830 = vmatpush.bf16.xpose.msra.mxu0 %v821
        %831 = vmatmul.bf16.gmra.mxu0 %v818
        %v832 = vpop.f32.mrf.mxu0
        %v833 = vadd.f32 0.0, %v832
        %v834 = vpop.f32.mrf.mxu0
        %835 = vdwg.mxu0
        %v836 = vsel %vm759, %v776, -inf
        %837 = vmax.xlane.f32.xlu0 %v836
        %v838 = vpop.xlane.xlu0 %837
        %v839 = vsel %vm759, %v795, -inf
        %840 = vmax.xlane.f32.xlu0 %v839
        %v841 = vpop.xlane.xlu0 %840
        %v842 = vsel %vm759, %v814, -inf
        %843 = vmax.xlane.f32.xlu0 %v842
        %v844 = vpop.xlane.xlu0 %843
        %v845 = vsel %vm759, %v833, -inf
        %846 = vmax.xlane.f32.xlu0 %v845
        %v847 = vpop.xlane.xlu0 %846
        %v848 = vsub.f32 -inf, %v838
        %v849 = vsub.f32 -inf, %v841
        %v850 = vsub.f32 -inf, %v844
        %v851 = vsub.f32 -inf, %v847
        %v852 = vmul.f32 %v848, 1.442695
        %v853 = vpow.pop %v852
        %v854 = vmul.f32 %v849, 1.442695
        %v855 = vpow.pop %v854
        %v856 = vmul.f32 %v850, 1.442695
        %v857 = vpow.pop %v856
        %v858 = vmul.f32 %v851, 1.442695
        %v859 = vpow.pop %v858
        %v860 = vsub.f32 %v776, %v838
        %v861 = vsub.f32 %v795, %v841
        %v862 = vsub.f32 %v814, %v844
        %v863 = vsub.f32 %v833, %v847
        %v864 = vmul.f32 %v860, 1.442695
        %v865 = vpow.pop %v864
        %v866 = vmul.f32 %v861, 1.442695
        %v867 = vpow.pop %v866
        %v868 = vmul.f32 %v862, 1.442695
        %v869 = vpow.pop %v868
        %v870 = vmul.f32 %v863, 1.442695
        %v871 = vpow.pop %v870
        %v872 = vmul.f32 %v853, 0.0
        %v873 = vmul.f32 %v855, 0.0
        %v874 = vmul.f32 %v857, 0.0
        %v875 = vmul.f32 %v859, 0.0
        %v876 = vsel %vm759, %v865, 0.0
        %877 = vadd.xlane.f32.xlu0 %v876
        %v878 = vpop.xlane.xlu0 %877
        %v879 = vsel %vm759, %v867, 0.0
        %880 = vadd.xlane.f32.xlu0 %v879
        %v881 = vpop.xlane.xlu0 %880
        %v882 = vsel %vm759, %v869, 0.0
        %883 = vadd.xlane.f32.xlu0 %v882
        %v884 = vpop.xlane.xlu0 %883
        %v885 = vsel %vm759, %v871, 0.0
        %886 = vadd.xlane.f32.xlu0 %v885
        %v887 = vpop.xlane.xlu0 %886
        %v888 = vadd.f32 %v872, %v878
        %v889 = vadd.f32 %v873, %v881
        %v890 = vadd.f32 %v874, %v884
        %v891 = vadd.f32 %v875, %v887
        %v892 = vpack.c.bf16 %v865, %v865
        %v893 = vpack.c.bf16 %v867, %v867
        %v894 = vpack.c.bf16 %v869, %v869
        %v895 = vpack.c.bf16 %v871, %v871
        %v897 = vsel %vm759, %v892, 0
        %vm899 = vcmask 1043456
        %v901 = vsel %vm899, %v755, 0
        %903 = vmatpush.bf16.msra.mxu0 0
        %904 = vmatpush.bf16.msra.mxu0 0
        %905 = vmatpush.bf16.msra.mxu0 0
        %906 = vmatpush.bf16.msra.mxu0 0
        %907 = vmatpush.bf16.msra.mxu0 0
        %908 = vmatpush.bf16.msra.mxu0 0
        %909 = vmatpush.bf16.msra.mxu0 0
        %910 = vmatpush.bf16.msra.mxu0 %v901
        %911 = vmatmul.bf16.gmra.mxu0 %v897
        %v912 = vpop.f32.mrf.mxu0
        %v913 = vadd.f32 0.0, %v912
        %v914 = vpop.f32.mrf.mxu0
        %915 = vdwg.mxu0
        %v917 = vsel %vm759, %v893, 0
        %v920 = vsel %vm899, %v756, 0
        %922 = vmatpush.bf16.msra.mxu0 0
        %923 = vmatpush.bf16.msra.mxu0 0
        %924 = vmatpush.bf16.msra.mxu0 0
        %925 = vmatpush.bf16.msra.mxu0 0
        %926 = vmatpush.bf16.msra.mxu0 0
        %927 = vmatpush.bf16.msra.mxu0 0
        %928 = vmatpush.bf16.msra.mxu0 0
        %929 = vmatpush.bf16.msra.mxu0 %v920
        %930 = vmatmul.bf16.gmra.mxu0 %v917
        %v931 = vpop.f32.mrf.mxu0
        %v932 = vadd.f32 0.0, %v931
        %v933 = vpop.f32.mrf.mxu0
        %934 = vdwg.mxu0
        %v936 = vsel %vm759, %v894, 0
        %v939 = vsel %vm899, %v757, 0
        %941 = vmatpush.bf16.msra.mxu0 0
        %942 = vmatpush.bf16.msra.mxu0 0
        %943 = vmatpush.bf16.msra.mxu0 0
        %944 = vmatpush.bf16.msra.mxu0 0
        %945 = vmatpush.bf16.msra.mxu0 0
        %946 = vmatpush.bf16.msra.mxu0 0
        %947 = vmatpush.bf16.msra.mxu0 0
        %948 = vmatpush.bf16.msra.mxu0 %v939
        %949 = vmatmul.bf16.gmra.mxu0 %v936
        %v950 = vpop.f32.mrf.mxu0
        %v951 = vadd.f32 0.0, %v950
        %v952 = vpop.f32.mrf.mxu0
        %953 = vdwg.mxu0
        %v955 = vsel %vm759, %v895, 0
        %v958 = vsel %vm899, %v758, 0
        %960 = vmatpush.bf16.msra.mxu0 0
        %961 = vmatpush.bf16.msra.mxu0 0
        %962 = vmatpush.bf16.msra.mxu0 0
        %963 = vmatpush.bf16.msra.mxu0 0
        %964 = vmatpush.bf16.msra.mxu0 0
        %965 = vmatpush.bf16.msra.mxu0 0
        %966 = vmatpush.bf16.msra.mxu0 0
        %967 = vmatpush.bf16.msra.mxu0 %v958
        %968 = vmatmul.bf16.gmra.mxu0 %v955
        %v969 = vpop.f32.mrf.mxu0
        %v970 = vadd.f32 0.0, %v969
        %v971 = vpop.f32.mrf.mxu0
        %972 = vdwg.mxu0
        %v973 = vadd.f32 %v872, %v913
        %v974 = vadd.f32 %v873, %v932
        %v975 = vadd.f32 %v874, %v951
        %v976 = vadd.f32 %v875, %v970
        %v977 = vrcp.pop %v888
        %v978 = vrcp.pop %v889
        %v979 = vrcp.pop %v890
        %v980 = vrcp.pop %v891
        %v981 = vmul.f32 %v973, %v977
        %v982 = vmul.f32 %v974, %v978
        %v983 = vmul.f32 %v975, %v979
        %v984 = vmul.f32 %v976, %v980
        %v985 = vpack.c.bf16 %v981, %v981
        %v986 = vpack.c.bf16 %v982, %v982
        %v987 = vpack.c.bf16 %v983, %v983
        %v988 = vpack.c.bf16 %v984, %v984
        %v989 = vld [vmem:[%s2] sm:$0xf]
        %v990 = vld [vmem:[%s2 + $0x4] sm:$0xf]
        %v991 = vld [vmem:[%s2 + $0x8] sm:$0xf]
        %v992 = vld [vmem:[%s2 + $0xc] sm:$0xf]
        %v994 = vsel %vm759, %v985, 0
        %v997 = vsel %vm899, %v989, 0
        %999 = vmatpush.bf16.msra.mxu0 0
        %1000 = vmatpush.bf16.msra.mxu0 0
        %1001 = vmatpush.bf16.msra.mxu0 0
        %1002 = vmatpush.bf16.msra.mxu0 0
        %1003 = vmatpush.bf16.msra.mxu0 0
        %1004 = vmatpush.bf16.msra.mxu0 0
        %1005 = vmatpush.bf16.msra.mxu0 0
        %1006 = vmatpush.bf16.msra.mxu0 %v997
        %1007 = vmatmul.bf16.gmra.mxu0 %v994
        %v1008 = vpop.f32.mrf.mxu0
        %v1009 = vadd.f32 0.0, %v1008
        %v1010 = vpop.f32.mrf.mxu0
        %1011 = vdwg.mxu0
        %v1013 = vsel %vm759, %v986, 0
        %v1016 = vsel %vm899, %v990, 0
        %1018 = vmatpush.bf16.msra.mxu0 0
        %1019 = vmatpush.bf16.msra.mxu0 0
        %1020 = vmatpush.bf16.msra.mxu0 0
        %1021 = vmatpush.bf16.msra.mxu0 0
        %1022 = vmatpush.bf16.msra.mxu0 0
        %1023 = vmatpush.bf16.msra.mxu0 0
        %1024 = vmatpush.bf16.msra.mxu0 0
        %1025 = vmatpush.bf16.msra.mxu0 %v1016
        %1026 = vmatmul.bf16.gmra.mxu0 %v1013
        %v1027 = vpop.f32.mrf.mxu0
        %v1028 = vadd.f32 0.0, %v1027
        %v1029 = vpop.f32.mrf.mxu0
        %1030 = vdwg.mxu0
        %v1032 = vsel %vm759, %v987, 0
        %v1035 = vsel %vm899, %v991, 0
        %1037 = vmatpush.bf16.msra.mxu0 0
        %1038 = vmatpush.bf16.msra.mxu0 0
        %1039 = vmatpush.bf16.msra.mxu0 0
        %1040 = vmatpush.bf16.msra.mxu0 0
        %1041 = vmatpush.bf16.msra.mxu0 0
        %1042 = vmatpush.bf16.msra.mxu0 0
        %1043 = vmatpush.bf16.msra.mxu0 0
        %1044 = vmatpush.bf16.msra.mxu0 %v1035
        %1045 = vmatmul.bf16.gmra.mxu0 %v1032
        %v1046 = vpop.f32.mrf.mxu0
        %v1047 = vadd.f32 0.0, %v1046
        %v1048 = vpop.f32.mrf.mxu0
        %1049 = vdwg.mxu0
        %v1051 = vsel %vm759, %v988, 0
        %v1054 = vsel %vm899, %v992, 0
        %1056 = vmatpush.bf16.msra.mxu0 0
        %1057 = vmatpush.bf16.msra.mxu0 0
        %1058 = vmatpush.bf16.msra.mxu0 0
        %1059 = vmatpush.bf16.msra.mxu0 0
        %1060 = vmatpush.bf16.msra.mxu0 0
        %1061 = vmatpush.bf16.msra.mxu0 0
        %1062 = vmatpush.bf16.msra.mxu0 0
        %1063 = vmatpush.bf16.msra.mxu0 %v1054
        %1064 = vmatmul.bf16.gmra.mxu0 %v1051
        %v1065 = vpop.f32.mrf.mxu0
        %v1066 = vadd.f32 0.0, %v1065
        %v1067 = vpop.f32.mrf.mxu0
        %1068 = vdwg.mxu0
        %v1069 = vsel %vm357, %v1009, 0.0
        %v1070 = vsel %vm357, %v1028, 0.0
        %v1071 = vadd.f32 %v1069, %v1070
        %v1072 = vsel %vm357, %v1047, 0.0
        %v1073 = vadd.f32 %v1071, %v1072
        %v1074 = vsel %vm357, %v1066, 0.0
        %v1075 = vadd.f32 %v1073, %v1074
        %v1076 = vperm.slane %v335, 0
        %v1077 = vadd.f32 %v1075, %v1076
        %v1078 = vadd.f32 %v334, %v1077
        %v1079 = vsel %vm357, %v1078, 0.0
        %1080 = vadd.xlane.f32.xlu0 %v1079
        %v1081 = vpop.xlane.xlu0 %1080
        %v1082 = vrcp.pop 32.0
        %v1083 = vmul.f32 32.0, %v1082
        %v1084 = vsub.f32 1.0, %v1083
        %v1085 = vmul.f32 %v1082, %v1084
        %v1086 = vadd.f32 %v1082, %v1085
        %vm1087 = vweird.f32 %v1082
        %v1088 = vsel %vm1087, %v1082, %v1086
        %v1089 = vmul.f32 %v1081, %v1088
        %v1090 = vsub.f32 %v1078, %v1089
        %v1091 = vmul.f32 %v1090, %v1090
        %v1092 = vsel %vm357, %v1091, 0.0
        %1093 = vadd.xlane.f32.xlu0 %v1092
        %v1094 = vpop.xlane.xlu0 %1093
        %v1095 = vmul.f32 %v1094, %v1088
        %v1096 = vadd.f32 %v1095, 1e-05
        %v1097 = vrsqrt.pop %v1096
        %v1098 = vmul.f32 %v1097, %v1096
        %v1099 = vmul.f32 %v1098, %v1097
        %v1100 = vmul.f32 0.5, %v1099
        %v1101 = vsub.f32 1.5, %v1100
        %v1102 = vmul.f32 %v1097, %v1101
        %vm1103 = vweird.f32 %v1096
        %vm1104 = vweird.f32 %v1097
        %vm1105 = vmor %vm1103, %vm1104
        %v1106 = vsel %vm1105, %v1097, %v1102
        %v1107 = vmul.f32 %v1090, %v1106
        %v1108 = vperm.slane %v335, 1
        %v1109 = vmul.f32 %v1107, %v1108
        %v1110 = vperm.slane %v335, 2
        %v1111 = vadd.f32 %v1109, %v1110
        %v1112 = vpack.c.bf16 %v1111, %v1111
        %v1113 = vld [vmem:[#allocation2] sm:$0xf]
        %v1114 = vld [vmem:[#allocation2 + $0x4] sm:$0xf]
        %v1115 = vld [vmem:[#allocation2 + $0x8] sm:$0xf]
        %v1116 = vld [vmem:[#allocation2 + $0xc] sm:$0xf]
        %v1117 = vld [vmem:[%s6] sm:$0x1]
        %v1118 = vld [vmem:[%s4] sm:$0xf]
        %v1119 = vld [vmem:[%s4 + $0x4] sm:$0xf]
        %v1120 = vld [vmem:[%s4 + $0x8] sm:$0xf]
        %v1121 = vld [vmem:[%s4 + $0xc] sm:$0xf]
        %v1122 = vld [vmem:[%s4 + $0x10] sm:$0xf]
        %v1123 = vld [vmem:[%s4 + $0x14] sm:$0xf]
        %v1124 = vld [vmem:[%s4 + $0x18] sm:$0xf]
        %v1125 = vld [vmem:[%s4 + $0x1c] sm:$0xf]
        %v1127 = vperm.slane %v1117, 0
        %v1133 = vunpack.c.l.b16 %v1113
        %v1134 = vunpack.c.l.b16 %v1114
        %v1135 = vunpack.c.l.b16 %v1115
        %v1136 = vunpack.c.l.b16 %v1116
        %v1137 = vpack.c.b16 %v1134, %v1133
        %v1138 = vpack.c.b16 %v1136, %v1135
        %v1142 = vsel %vm357, %v1112, 0
        %1144 = vmatpush.bf16.msra.mxu0 0
        %1145 = vmatpush.bf16.msra.mxu0 0
        %1146 = vmatpush.bf16.msra.mxu0 0
        %1147 = vmatpush.bf16.msra.mxu0 0
        %1148 = vmatpush.bf16.msra.mxu0 0
        %1149 = vmatpush.bf16.msra.mxu0 0
        %1150 = vmatpush.bf16.msra.mxu0 %v1138
        %1151 = vmatpush.bf16.msra.mxu0 %v1137
        %1152 = vmatmul.bf16.gmra.mxu0 %v1142
        %v1153 = vpop.f32.mrf.mxu0
        %v1154 = vadd.f32 %v1127, %v1153
        %v1155 = vpop.f32.mrf.mxu0
        %1156 = vdwg.mxu0
        %v1157 = vmul.f32 %v1154, 0.5
        %v1158 = vmul.f32 %v1154, 0.044715
        %v1159 = vmul.f32 %v1158, %v1154
        %v1160 = vmul.f32 %v1159, %v1154
        %v1161 = vadd.f32 %v1154, %v1160
        %v1162 = vmul.f32 %v1161, 0.7978846
        %v1163 = vtanh.pop %v1162
        %v1164 = vadd.f32 %v1163, 1.0
        %v1165 = vmul.f32 %v1157, %v1164
        %v1166 = vpack.c.bf16 %v1165, %v1165
        %v1167 = vperm.slane %v335, 3
        %v1176 = vunpack.c.l.b16 %v1118
        %v1177 = vunpack.c.l.b16 %v1119
        %v1178 = vunpack.c.l.b16 %v1120
        %v1179 = vunpack.c.l.b16 %v1121
        %v1180 = vunpack.c.l.b16 %v1122
        %v1181 = vunpack.c.l.b16 %v1123
        %v1182 = vunpack.c.l.b16 %v1124
        %v1183 = vunpack.c.l.b16 %v1125
        %v1184 = vpack.c.b16 %v1177, %v1176
        %v1185 = vpack.c.b16 %v1179, %v1178
        %v1186 = vpack.c.b16 %v1181, %v1180
        %v1187 = vpack.c.b16 %v1183, %v1182
        %vm1192 = vcmask 523264
        %v1194 = vsel %vm1192, %v1166, 0
        %1196 = vmatpush.bf16.msra.mxu0 0
        %1197 = vmatpush.bf16.msra.mxu0 0
        %1198 = vmatpush.bf16.msra.mxu0 0
        %1199 = vmatpush.bf16.msra.mxu0 0
        %1200 = vmatpush.bf16.msra.mxu0 %v1187
        %1201 = vmatpush.bf16.msra.mxu0 %v1186
        %1202 = vmatpush.bf16.msra.mxu0 %v1185
        %1203 = vmatpush.bf16.msra.mxu0 %v1184
        %1204 = vmatmul.bf16.gmra.mxu0 %v1194
        %v1205 = vpop.f32.mrf.mxu0
        %v1206 = vadd.f32 %v1167, %v1205
        %v1207 = vpop.f32.mrf.mxu0
        %1208 = vdwg.mxu0
        %v1209 = vadd.f32 %v1111, %v1206
        %v1210 = vsel %vm357, %v1209, 0.0
        %1211 = vadd.xlane.f32.xlu0 %v1210
        %v1212 = vpop.xlane.xlu0 %1211
        %v1213 = vmul.f32 %v1212, %v1088
        %v1214 = vsub.f32 %v1209, %v1213
        %v1215 = vmul.f32 %v1214, %v1214
        %v1216 = vsel %vm357, %v1215, 0.0
        %1217 = vadd.xlane.f32.xlu0 %v1216
        %v1218 = vpop.xlane.xlu0 %1217
        %v1219 = vmul.f32 %v1218, %v1088
        %v1220 = vadd.f32 %v1219, 1e-05
        %v1221 = vrsqrt.pop %v1220
        %v1222 = vmul.f32 %v1221, %v1220
        %v1223 = vmul.f32 %v1222, %v1221
        %v1224 = vmul.f32 0.5, %v1223
        %v1225 = vsub.f32 1.5, %v1224
        %v1226 = vmul.f32 %v1221, %v1225
        %vm1227 = vweird.f32 %v1220
        %vm1228 = vweird.f32 %v1221
        %vm1229 = vmor %vm1227, %vm1228
        %v1230 = vsel %vm1229, %v1221, %v1226
        %v1231 = vmul.f32 %v1214, %v1230
        %v1232 = vperm.slane %v335, 4
        %v1233 = vmul.f32 %v1231, %v1232
        %v1234 = vperm.slane %v335, 5
        %v1235 = vadd.f32 %v1233, %v1234
        %1236 = vst.msk [vmem:[%s328] sm:$0xff] %vm357, %v1235
        %s1237 = sand.u32 %s205, 1
        %s1238 = scalar_lea.sflag [#allocation4], %s1237
        %s1239 = sand.u32 %s205, 1
        %s1240 = smul.addr %s1239, 8
        %s1241 = scalar_lea.vmem [#allocation7], %s1240
        // Predicated region
        $region61: #{tpu_custom_call.1} parent=51 // pred_check
          %p1242 = pneg %p215
        $region62: #{tpu_custom_call.1} parent=51 // pred_check_branch
          %1244 = sbr.rel (%p1242) target = $region64
        $region63: #{tpu_custom_call.1} parent=51 // pred_region
          %1246 = vsyncadd %s1238, 0
          %s1247 = smul.addr %s24, 8
          %s1248 = scalar_lea.hbm %s8, %s1247
          %s1250 = sshll.u32 %s1241, 4
          %s1251 = int_to_ptr.vmem [resolvable:$true] %s1250
          %s1252 = sshll.u32 %s1248, 4
          %s1253 = int_to_ptr.hbm [resolvable:$true] %s1252
          %1255 = dma.vmem_to_hbm [thread:$0]  %s1251, 128, %s1253, %s1238
        $region64: #{tpu_custom_call.1} parent=51 // pred_fallthru
          _
      $region52: #{tpu_custom_call.1} parent=5 // pred_fallthru
        _
      %p1256 = scmp.le.s32.totalorder 2, %s19
      // Predicated region
      $region65: #{tpu_custom_call.1} parent=5 // pred_check
        %p1257 = pneg %p1256
      $region66: #{tpu_custom_call.1} parent=5 // pred_check_branch
        %1259 = sbr.rel (%p1257) target = $region68
      $region67: #{tpu_custom_call.1} parent=5 // pred_region
        %s1260 = ssub.s32 %s19, 2
        // Predicated region
        $region69: #{tpu_custom_call.1} parent=67 // pred_check
          %p1261 = pneg %p221
        $region70: #{tpu_custom_call.1} parent=67 // pred_check_branch
          %1263 = sbr.rel (%p1261) target = $region72
        $region71: #{tpu_custom_call.1} parent=67 // pred_region
          %s1264 = sand.u32 %s206, 1
          %s1265 = scalar_lea.sflag [#allocation4], %s1264
          %s1266 = sand.u32 %s206, 1
          %s1267 = smul.addr %s1266, 8
          %s1268 = scalar_lea.vmem [#allocation7], %s1267
          %1270 = dma.done %s1265, 128
        $region72: #{tpu_custom_call.1} parent=67 // pred_fallthru
          _
      $region68: #{tpu_custom_call.1} parent=5 // pred_fallthru
        _
    $region6: #{tpu_custom_call.1} parent=1 // loop_footer
      %s23 = sadd.s32 1, %s19
    $region7: #{tpu_custom_call.1} parent=1 // loop_footer_branch
      %18 = sbr.rel target = $region3
    $region8: #{tpu_custom_call.1} parent=1 // loop_exit
      _
    %1271 = vsyncpa [#allocation3], 1
    %s1272 = scalar_lea.sflag [#allocation3], 1
    %1273 = vsyncpa %s1272, 1
    %1274 = vsyncpa [#allocation6], 1
    %1275 = vsyncpa [#allocation4], 1
    %s1276 = scalar_lea.sflag [#allocation4], 1
    %1277 = vsyncpa %s1276, 1

</llo_original>
